<compile_context>
chip_gen: v7x
topology: tpu7x:2x2x1
jax: 0.10.0
libtpu: 0.0.40
codegen_flags: <defaults>
</compile_context>

<pallas_src>
import functools

import jax
import jax.numpy as jnp
from jax.experimental import pallas as pl
from jax.experimental.pallas import tpu as pltpu


def _perceiver_attn_kernel(
    x_ref, lat_ref,               # (TB, N_X, DV), (TB, N_LAT, DT)
    gm_ref, bm_ref,               # (1, DV) LayerNorm(media) gamma/beta
    gl_ref, bl_ref,               # (1, DT) LayerNorm(latents) gamma/beta
    wq_ref,                       # (DT, INNER)   (softmax scale pre-folded)
    wk_ref,                       # (DV, INNER)
    wv_ref,                       # (DV, INNER)
    wout_ref,                     # (INNER, DT)
    o_ref,                        # (TB, N_LAT, DT)
    o_heads_ref,                  # VMEM scratch (TB, N_LAT, INNER)
    *, heads, dim_head,
):
    eps = 1e-5
    tb, n_x, dv = x_ref.shape
    _, n_lat, dt = lat_ref.shape
    inner = heads * dim_head

    # Compute dtype fed to the MXU = native weight dtype (bf16 weights -> bf16
    # MXU inputs with f32 accumulation; f32 weights -> f32).
    cdt = wq_ref.dtype

    # Flatten the TB slices so projections are single big matmuls.
    x = x_ref[...].reshape(tb * n_x, dv)
    lat = lat_ref[...].reshape(tb * n_lat, dt)

    def layernorm(z, g, b):
        zf = z.astype(jnp.float32)
        mu = jnp.mean(zf, axis=-1, keepdims=True)
        var = jnp.mean((zf - mu) ** 2, axis=-1, keepdims=True)
        zn = (zf - mu) * jax.lax.rsqrt(var + eps)
        return (zn * g.astype(jnp.float32) + b.astype(jnp.float32)).astype(cdt)

    xn = layernorm(x, gm_ref[0], bm_ref[0])       # (TB*N_X,  DV)
    latn = layernorm(lat, gl_ref[0], bl_ref[0])   # (TB*N_LAT, DT)

    # Projections (MXU), f32 accumulation; cast back to compute dtype once and
    # reshape to 3-D once (not per head).
    q = jnp.dot(latn, wq_ref[...], preferred_element_type=jnp.float32)
    k = jnp.dot(xn, wk_ref[...], preferred_element_type=jnp.float32)
    v = jnp.dot(xn, wv_ref[...], preferred_element_type=jnp.float32)
    q3 = q.astype(cdt).reshape(tb, n_lat, inner)
    k3 = k.astype(cdt).reshape(tb, n_x, inner)
    v3 = v.astype(cdt).reshape(tb, n_x, inner)

    # Per-head attention: heads is small & static; each head is a TB-batched
    # 3-D einsum (single batch dim).  The per-head context vectors are written
    # into lane slices of a VMEM scratch slab so the out-projection below is a
    # single wide matmul.
    for h in range(heads):
        lo, hi = h * dim_head, (h + 1) * dim_head
        qh = q3[:, :, lo:hi]                       # (TB, N_LAT, d)
        kh = k3[:, :, lo:hi]                       # (TB, N_X,  d)
        vh = v3[:, :, lo:hi]                       # (TB, N_X,  d)

        sim = jnp.einsum("bqd,bkd->bqk", qh, kh,
                         preferred_element_type=jnp.float32)     # (TB, N_LAT, N_X)
        sim = sim - jnp.max(sim, axis=-1, keepdims=True)
        p = jnp.exp(sim)
        attn = p * pl.reciprocal(jnp.sum(p, axis=-1, keepdims=True), approx=True)

        oh = jnp.einsum("bqk,bkd->bqd", attn.astype(cdt), vh,
                        preferred_element_type=jnp.float32)      # (TB, N_LAT, d)
        o_heads_ref[:, :, lo:hi] = oh.astype(cdt)

    # Output projection: one (TB*N_LAT, INNER) x (INNER, DT) MXU matmul.
    o = o_heads_ref[...].reshape(tb * n_lat, inner)
    out = jnp.dot(o, wout_ref[...], preferred_element_type=jnp.float32)
    o_ref[...] = out.reshape(tb, n_lat, dt).astype(o_ref.dtype)


def perceiver_attention(x, latents, params, *, heads, dim_head,
                        vmem_budget_bytes=40 * 1024 * 1024):
    """x: (b, t, n_x, Dv)  latents: (b, t, n_lat, Dt)  ->  (b, t, n_lat, Dt)"""
    b, t, n_x, dv = x.shape
    _, _, n_lat, dt = latents.shape
    inner = heads * dim_head
    scale = dim_head ** (-0.5)
    B = b * t

    x_f = x.reshape(B, n_x, dv)
    lat_f = latents.reshape(B, n_lat, dt)

    gm = params["ln_media_g"].reshape(1, dv)
    bm = params["ln_media_b"].reshape(1, dv)
    gl = params["ln_lat_g"].reshape(1, dt)
    bl = params["ln_lat_b"].reshape(1, dt)
    wq = params["wq"] * scale            # fold softmax scale into the q projection
    wkv = params["wkv"]
    wk = wkv[:, :inner]                  # split so the kernel never slices kv
    wv = wkv[:, inner:]
    wout = params["wout"]

    w_bytes = jnp.dtype(wq.dtype).itemsize
    a_bytes = jnp.dtype(x.dtype).itemsize

    # --- VMEM budgeting for the batch tile TB ------------------------------
    # weights + LN params (double-buffered by the pipeline)
    fixed = 2 * (wq.size + wk.size + wv.size + wout.size) * w_bytes \
        + 2 * (gm.size + bm.size + gl.size + bl.size) * a_bytes
    # per-(b,t)-slice cost: double-buffered in/out tiles, the head-output
    # scratch slab, and f32 intermediates.
    per_slice = (
        2 * (n_x * dv + 2 * n_lat * dt) * a_bytes
        + n_lat * inner * w_bytes                    # head-output scratch
        + 4 * (n_x * dv + n_lat * dt                 # xn, latn
               + n_lat * inner + 2 * n_x * inner     # q, k, v
               + n_lat * n_x + n_lat * dt))          # scores + projected out

    tb = 1
    for cand in range(1, B + 1):
        if B % cand != 0:
            continue
        if B >= 2 and B // cand < 2:
            continue   # keep >= 2 grid steps so both v7x TensorCores get work
        if fixed + cand * per_slice <= vmem_budget_bytes:
            tb = cand
    grid_len = B // tb

    # --- advisory cost estimate for the XLA scheduler ----------------------
    flops = 2 * B * (n_lat * dt * inner                     # q projection
                     + 2 * n_x * dv * inner                 # k/v projections
                     + 2 * heads * n_lat * n_x * dim_head   # qk^T and attn@v
                     + n_lat * inner * dt)                  # out projection
    transcendentals = B * (heads * n_lat * n_x              # exp
                           + heads * n_lat                  # reciprocal
                           + n_x + n_lat)                   # rsqrt
    bytes_accessed = (x_f.size + 2 * lat_f.size) * a_bytes \
        + (wq.size + wk.size + wv.size + wout.size) * w_bytes \
        + (gm.size + bm.size + gl.size + bl.size) * a_bytes

    kernel = functools.partial(_perceiver_attn_kernel, heads=heads, dim_head=dim_head)
    full = lambda shape: pl.BlockSpec(shape, lambda i: (0,) * len(shape))

    out = pl.pallas_call(
        kernel,
        out_shape=jax.ShapeDtypeStruct((B, n_lat, dt), latents.dtype),
        grid=(grid_len,),
        in_specs=[
            pl.BlockSpec((tb, n_x, dv), lambda i: (i, 0, 0)),
            pl.BlockSpec((tb, n_lat, dt), lambda i: (i, 0, 0)),
            full((1, dv)), full((1, dv)),
            full((1, dt)), full((1, dt)),
            full((dt, inner)),
            full((dv, inner)),
            full((dv, inner)),
            full((inner, dt)),
        ],
        out_specs=pl.BlockSpec((tb, n_lat, dt), lambda i: (i, 0, 0)),
        scratch_shapes=[pltpu.VMEM((tb, n_lat, inner), wq.dtype)],
        compiler_params=pltpu.CompilerParams(
            dimension_semantics=("parallel",),
            vmem_limit_bytes=48 * 1024 * 1024,
        ),
        cost_estimate=pl.CostEstimate(
            flops=flops,
            transcendentals=transcendentals,
            bytes_accessed=bytes_accessed,
        ),
    )(x_f, lat_f, gm, bm, gl, bl, wq, wk, wv, wout)

    return out.reshape(b, t, n_lat, dt)


def perceiver_attention_ref(x, latents, params, *, heads, dim_head):
    """Pure-JAX reference mirroring the PyTorch forward."""
    eps = 1e-5
    inner = heads * dim_head
    scale = dim_head ** (-0.5)

    def ln(z, g, b):
        mu = jnp.mean(z, axis=-1, keepdims=True)
        var = jnp.mean((z - mu) ** 2, axis=-1, keepdims=True)
        return (z - mu) * jax.lax.rsqrt(var + eps) * g + b

    xn = ln(x, params["ln_media_g"], params["ln_media_b"])
    latn = ln(latents, params["ln_lat_g"], params["ln_lat_b"])
    q = latn @ params["wq"]                 # (b,t,n_lat,inner)
    kv = xn @ params["wkv"]                 # (b,t,n_x,2*inner)
    k, v = kv[..., :inner], kv[..., inner:]

    def split_heads(z):                     # b t n (h d) -> b h t n d
        b_, t_, n_, _ = z.shape
        return jnp.transpose(z.reshape(b_, t_, n_, heads, dim_head), (0, 3, 1, 2, 4))

    q, k, v = split_heads(q) * scale, split_heads(k), split_heads(v)
    sim = jnp.einsum("...id,...jd->...ij", q, k)
    sim = sim - jnp.max(sim, axis=-1, keepdims=True)
    attn = jax.nn.softmax(sim, axis=-1)
    out = jnp.einsum("...ij,...jd->...id", attn, v)   # b h t n d
    b_, h_, t_, n_, d_ = out.shape
    out = jnp.transpose(out, (0, 2, 3, 1, 4)).reshape(b_, t_, n_, h_ * d_)
    return out @ params["wout"]


if __name__ == "__main__":
    # Small, module-consistent shapes.
    b, t = 2, 2
    n_x, n_lat = 16, 8
    vision_width, text_width = 32, 32
    heads, dim_head = 4, 16
    inner = heads * dim_head

    key = jax.random.PRNGKey(0)
    k_x, k_l, k_gm, k_bm, k_gl, k_bl, k_q, k_kv, k_o = jax.random.split(key, 9)

    x = jax.random.normal(k_x, (b, t, n_x, vision_width), dtype=jnp.float32)
    latents = jax.random.normal(k_l, (b, t, n_lat, text_width), dtype=jnp.float32)

    params = {
        # LayerNorm params (PyTorch default init is ones/zeros; perturb slightly
        # so the affine transform is actually exercised).
        "ln_media_g": 1.0 + 0.1 * jax.random.normal(k_gm, (vision_width,), jnp.float32),
        "ln_media_b": 0.1 * jax.random.normal(k_bm, (vision_width,), jnp.float32),
        "ln_lat_g": 1.0 + 0.1 * jax.random.normal(k_gl, (text_width,), jnp.float32),
        "ln_lat_b": 0.1 * jax.random.normal(k_bl, (text_width,), jnp.float32),
        # Linear weights stored as (in, out) so y = x @ W.
        "wq": 0.05 * jax.random.normal(k_q, (text_width, inner), jnp.float32),
        "wkv": 0.05 * jax.random.normal(k_kv, (vision_width, 2 * inner), jnp.float32),
        "wout": 0.05 * jax.random.normal(k_o, (inner, text_width), jnp.float32),
    }

    out = perceiver_attention(x, latents, params, heads=heads, dim_head=dim_head)
    out = jax.block_until_ready(out)

    ref = perceiver_attention_ref(x, latents, params, heads=heads, dim_head=dim_head)
    assert out.shape == (b, t, n_lat, text_width)
    # Slightly looser tolerance: the kernel uses the EUP approximate reciprocal
    # for the softmax denominator (expected, not a bug).
    assert jnp.allclose(out, ref, atol=2e-3, rtol=2e-3), "Pallas kernel mismatch vs reference"

    print("KERNEL_OK")
</pallas_src>

<mosaic_0001>
module attributes {stable_mosaic.version = 11 : i64} {
  func.func @_perceiver_attn_kernel(%arg0: i32, %arg1: memref<2x16x32xf32, #tpu.memory_space<vmem>>, %arg2: memref<2x8x32xf32, #tpu.memory_space<vmem>>, %arg3: memref<1x32xf32, #tpu.memory_space<vmem>>, %arg4: memref<1x32xf32, #tpu.memory_space<vmem>>, %arg5: memref<1x32xf32, #tpu.memory_space<vmem>>, %arg6: memref<1x32xf32, #tpu.memory_space<vmem>>, %arg7: memref<32x64xf32, #tpu.memory_space<vmem>>, %arg8: memref<32x64xf32, #tpu.memory_space<vmem>>, %arg9: memref<32x64xf32, #tpu.memory_space<vmem>>, %arg10: memref<64x32xf32, #tpu.memory_space<vmem>>, %arg11: memref<2x8x32xf32, #tpu.memory_space<vmem>>, %arg12: memref<2x8x64xf32, #tpu.memory_space<vmem>>) attributes {dimension_semantics = [#tpu.dimension_semantics<parallel>], iteration_bounds = array<i64: 2>, scalar_prefetch = 0 : i64, scratch_operands = 1 : i64, tpu.core_type = #tpu.core_type<tc>, window_params = [{transform_indices = @transform_0, window_bounds = array<i64: 2, 16, 32>}, {transform_indices = @transform_1, window_bounds = array<i64: 2, 8, 32>}, {pipeline_mode = #tpu.pipeline_mode<synchronous>, transform_indices = @transform_2, window_bounds = array<i64: 1, 32>}, {pipeline_mode = #tpu.pipeline_mode<synchronous>, transform_indices = @transform_3, window_bounds = array<i64: 1, 32>}, {pipeline_mode = #tpu.pipeline_mode<synchronous>, transform_indices = @transform_4, window_bounds = array<i64: 1, 32>}, {pipeline_mode = #tpu.pipeline_mode<synchronous>, transform_indices = @transform_5, window_bounds = array<i64: 1, 32>}, {pipeline_mode = #tpu.pipeline_mode<synchronous>, transform_indices = @transform_6, window_bounds = array<i64: 32, 64>}, {pipeline_mode = #tpu.pipeline_mode<synchronous>, transform_indices = @transform_7, window_bounds = array<i64: 32, 64>}, {pipeline_mode = #tpu.pipeline_mode<synchronous>, transform_indices = @transform_8, window_bounds = array<i64: 32, 64>}, {pipeline_mode = #tpu.pipeline_mode<synchronous>, transform_indices = @transform_9, window_bounds = array<i64: 64, 32>}, {transform_indices = @transform_10, window_bounds = array<i64: 2, 8, 32>}]} {
    %c0 = arith.constant 0 : index
    %c0_0 = arith.constant 0 : index
    %c0_1 = arith.constant 0 : index
    %0 = vector.load %arg1[%c0, %c0_0, %c0_1] : memref<2x16x32xf32, #tpu.memory_space<vmem>>, vector<2x16x32xf32>
    %1 = vector.shape_cast %0 : vector<2x16x32xf32> to vector<32x32xf32>
    %c0_2 = arith.constant 0 : index
    %c0_3 = arith.constant 0 : index
    %c0_4 = arith.constant 0 : index
    %2 = vector.load %arg2[%c0_2, %c0_3, %c0_4] : memref<2x8x32xf32, #tpu.memory_space<vmem>>, vector<2x8x32xf32>
    %3 = vector.shape_cast %2 : vector<2x8x32xf32> to vector<16x32xf32>
    %c0_5 = arith.constant 0 : index
    %c0_6 = arith.constant 0 : index
    %4 = vector.load %arg3[%c0_5, %c0_6] : memref<1x32xf32, #tpu.memory_space<vmem>>, vector<1x32xf32>
    %5 = vector.shape_cast %4 : vector<1x32xf32> to vector<32xf32>
    %c0_7 = arith.constant 0 : index
    %c0_8 = arith.constant 0 : index
    %6 = vector.load %arg4[%c0_7, %c0_8] : memref<1x32xf32, #tpu.memory_space<vmem>>, vector<1x32xf32>
    %7 = vector.shape_cast %6 : vector<1x32xf32> to vector<32xf32>
    %cst = arith.constant dense<0.000000e+00> : vector<32xf32>
    %8 = vector.multi_reduction <add>, %1, %cst [1] : vector<32x32xf32> to vector<32xf32>
    %9 = vector.shape_cast %8 : vector<32xf32> to vector<32x1xf32>
    %cst_9 = arith.constant 3.200000e+01 : f32
    %10 = vector.broadcast %cst_9 : f32 to vector<32x1xf32>
    %11 = arith.divf %9, %10 : vector<32x1xf32>
    %12 = vector.broadcast %11 : vector<32x1xf32> to vector<32x32xf32>
    %13 = arith.subf %1, %12 : vector<32x32xf32>
    %14 = arith.mulf %13, %13 : vector<32x32xf32>
    %cst_10 = arith.constant dense<0.000000e+00> : vector<32xf32>
    %15 = vector.multi_reduction <add>, %14, %cst_10 [1] : vector<32x32xf32> to vector<32xf32>
    %16 = vector.shape_cast %15 : vector<32xf32> to vector<32x1xf32>
    %cst_11 = arith.constant 3.200000e+01 : f32
    %17 = vector.broadcast %cst_11 : f32 to vector<32x1xf32>
    %18 = arith.divf %16, %17 : vector<32x1xf32>
    %19 = vector.broadcast %11 : vector<32x1xf32> to vector<32x32xf32>
    %20 = arith.subf %1, %19 : vector<32x32xf32>
    %cst_12 = arith.constant 9.99999974E-6 : f32
    %21 = vector.broadcast %cst_12 : f32 to vector<32x1xf32>
    %22 = arith.addf %18, %21 : vector<32x1xf32>
    %23 = math.rsqrt %22 : vector<32x1xf32>
    %24 = vector.broadcast %23 : vector<32x1xf32> to vector<32x32xf32>
    %25 = arith.mulf %20, %24 : vector<32x32xf32>
    %26 = vector.shape_cast %5 : vector<32xf32> to vector<1x32xf32>
    %27 = vector.broadcast %26 : vector<1x32xf32> to vector<32x32xf32>
    %28 = arith.mulf %25, %27 : vector<32x32xf32>
    %29 = vector.shape_cast %7 : vector<32xf32> to vector<1x32xf32>
    %30 = vector.broadcast %29 : vector<1x32xf32> to vector<32x32xf32>
    %31 = arith.addf %28, %30 : vector<32x32xf32>
    %c0_13 = arith.constant 0 : index
    %c0_14 = arith.constant 0 : index
    %32 = vector.load %arg5[%c0_13, %c0_14] : memref<1x32xf32, #tpu.memory_space<vmem>>, vector<1x32xf32>
    %33 = vector.shape_cast %32 : vector<1x32xf32> to vector<32xf32>
    %c0_15 = arith.constant 0 : index
    %c0_16 = arith.constant 0 : index
    %34 = vector.load %arg6[%c0_15, %c0_16] : memref<1x32xf32, #tpu.memory_space<vmem>>, vector<1x32xf32>
    %35 = vector.shape_cast %34 : vector<1x32xf32> to vector<32xf32>
    %cst_17 = arith.constant dense<0.000000e+00> : vector<16xf32>
    %36 = vector.multi_reduction <add>, %3, %cst_17 [1] : vector<16x32xf32> to vector<16xf32>
    %37 = vector.shape_cast %36 : vector<16xf32> to vector<16x1xf32>
    %cst_18 = arith.constant 3.200000e+01 : f32
    %38 = vector.broadcast %cst_18 : f32 to vector<16x1xf32>
    %39 = arith.divf %37, %38 : vector<16x1xf32>
    %40 = vector.broadcast %39 : vector<16x1xf32> to vector<16x32xf32>
    %41 = arith.subf %3, %40 : vector<16x32xf32>
    %42 = arith.mulf %41, %41 : vector<16x32xf32>
    %cst_19 = arith.constant dense<0.000000e+00> : vector<16xf32>
    %43 = vector.multi_reduction <add>, %42, %cst_19 [1] : vector<16x32xf32> to vector<16xf32>
    %44 = vector.shape_cast %43 : vector<16xf32> to vector<16x1xf32>
    %cst_20 = arith.constant 3.200000e+01 : f32
    %45 = vector.broadcast %cst_20 : f32 to vector<16x1xf32>
    %46 = arith.divf %44, %45 : vector<16x1xf32>
    %47 = vector.broadcast %39 : vector<16x1xf32> to vector<16x32xf32>
    %48 = arith.subf %3, %47 : vector<16x32xf32>
    %cst_21 = arith.constant 9.99999974E-6 : f32
    %49 = vector.broadcast %cst_21 : f32 to vector<16x1xf32>
    %50 = arith.addf %46, %49 : vector<16x1xf32>
    %51 = math.rsqrt %50 : vector<16x1xf32>
    %52 = vector.broadcast %51 : vector<16x1xf32> to vector<16x32xf32>
    %53 = arith.mulf %48, %52 : vector<16x32xf32>
    %54 = vector.shape_cast %33 : vector<32xf32> to vector<1x32xf32>
    %55 = vector.broadcast %54 : vector<1x32xf32> to vector<16x32xf32>
    %56 = arith.mulf %53, %55 : vector<16x32xf32>
    %57 = vector.shape_cast %35 : vector<32xf32> to vector<1x32xf32>
    %58 = vector.broadcast %57 : vector<1x32xf32> to vector<16x32xf32>
    %59 = arith.addf %56, %58 : vector<16x32xf32>
    %c0_22 = arith.constant 0 : index
    %c0_23 = arith.constant 0 : index
    %60 = vector.load %arg7[%c0_22, %c0_23] : memref<32x64xf32, #tpu.memory_space<vmem>>, vector<32x64xf32>
    %cst_24 = arith.constant dense<0.000000e+00> : vector<16x64xf32>
    %61 = tpu.matmul %59, %60, %cst_24 {dimension_numbers = #tpu.dot_dimension_numbers<[1], [0], [0], [1], [0, 0, 1, 1], [], []>} : vector<16x32xf32>, vector<32x64xf32>, vector<16x64xf32> -> vector<16x64xf32>
    %c0_25 = arith.constant 0 : index
    %c0_26 = arith.constant 0 : index
    %62 = vector.load %arg8[%c0_25, %c0_26] : memref<32x64xf32, #tpu.memory_space<vmem>>, vector<32x64xf32>
    %cst_27 = arith.constant dense<0.000000e+00> : vector<32x64xf32>
    %63 = tpu.matmul %31, %62, %cst_27 {dimension_numbers = #tpu.dot_dimension_numbers<[1], [0], [0], [1], [0, 0, 1, 1], [], []>} : vector<32x32xf32>, vector<32x64xf32>, vector<32x64xf32> -> vector<32x64xf32>
    %c0_28 = arith.constant 0 : index
    %c0_29 = arith.constant 0 : index
    %64 = vector.load %arg9[%c0_28, %c0_29] : memref<32x64xf32, #tpu.memory_space<vmem>>, vector<32x64xf32>
    %cst_30 = arith.constant dense<0.000000e+00> : vector<32x64xf32>
    %65 = tpu.matmul %31, %64, %cst_30 {dimension_numbers = #tpu.dot_dimension_numbers<[1], [0], [0], [1], [0, 0, 1, 1], [], []>} : vector<32x32xf32>, vector<32x64xf32>, vector<32x64xf32> -> vector<32x64xf32>
    %66 = vector.shape_cast %61 : vector<16x64xf32> to vector<2x8x64xf32>
    %67 = vector.shape_cast %63 : vector<32x64xf32> to vector<2x16x64xf32>
    %68 = vector.shape_cast %65 : vector<32x64xf32> to vector<2x16x64xf32>
    %69 = vector.extract_strided_slice %66 {offsets = [0, 0, 0], sizes = [2, 8, 16], strides = [1, 1, 1]} : vector<2x8x64xf32> to vector<2x8x16xf32>
    %70 = vector.extract_strided_slice %67 {offsets = [0, 0, 0], sizes = [2, 16, 16], strides = [1, 1, 1]} : vector<2x16x64xf32> to vector<2x16x16xf32>
    %71 = vector.extract_strided_slice %68 {offsets = [0, 0, 0], sizes = [2, 16, 16], strides = [1, 1, 1]} : vector<2x16x64xf32> to vector<2x16x16xf32>
    "tpu.trace_start"() <{level = 10 : i32, message = "bqd,bkd->bqk"}> : () -> ()
    %cst_31 = arith.constant dense<0.000000e+00> : vector<2x8x16xf32>
    %72 = tpu.matmul %69, %70, %cst_31 {dimension_numbers = #tpu.dot_dimension_numbers<[2], [2], [1], [1], [0, 0, 0, 1, 1, 1], [0], [0]>} : vector<2x8x16xf32>, vector<2x16x16xf32>, vector<2x8x16xf32> -> vector<2x8x16xf32>
    "tpu.trace_stop"() : () -> ()
    %cst_32 = arith.constant dense<0xFF800000> : vector<2x8xf32>
    %73 = vector.multi_reduction <maximumf>, %72, %cst_32 [2] : vector<2x8x16xf32> to vector<2x8xf32>
    %74 = vector.shape_cast %73 : vector<2x8xf32> to vector<2x8x1xf32>
    %75 = vector.broadcast %74 : vector<2x8x1xf32> to vector<2x8x16xf32>
    %76 = arith.subf %72, %75 : vector<2x8x16xf32>
    %77 = math.exp %76 : vector<2x8x16xf32>
    %cst_33 = arith.constant dense<0.000000e+00> : vector<2x8xf32>
    %78 = vector.multi_reduction <add>, %77, %cst_33 [2] : vector<2x8x16xf32> to vector<2x8xf32>
    %79 = vector.shape_cast %78 : vector<2x8xf32> to vector<2x8x1xf32>
    %80 = tpu.reciprocal %79 {approx = true} : vector<2x8x1xf32> -> vector<2x8x1xf32>
    %81 = vector.broadcast %80 : vector<2x8x1xf32> to vector<2x8x16xf32>
    %82 = arith.mulf %77, %81 : vector<2x8x16xf32>
    "tpu.trace_start"() <{level = 10 : i32, message = "bqk,bkd->bqd"}> : () -> ()
    %cst_34 = arith.constant dense<0.000000e+00> : vector<2x8x16xf32>
    %83 = tpu.matmul %82, %71, %cst_34 {dimension_numbers = #tpu.dot_dimension_numbers<[2], [1], [1], [2], [0, 0, 0, 1, 1, 2], [0], [0]>} : vector<2x8x16xf32>, vector<2x16x16xf32>, vector<2x8x16xf32> -> vector<2x8x16xf32>
    "tpu.trace_stop"() : () -> ()
    %c0_35 = arith.constant 0 : index
    %c0_36 = arith.constant 0 : index
    %c0_37 = arith.constant 0 : index
    %84 = vector.load %arg12[%c0_35, %c0_36, %c0_37] : memref<2x8x64xf32, #tpu.memory_space<vmem>>, vector<2x8x16xf32>
    tpu.vector_store %arg12[%c0_35, %c0_36, %c0_37], %83 {strides = array<i32>} : memref<2x8x64xf32, #tpu.memory_space<vmem>>, vector<2x8x16xf32>,
    %85 = vector.extract_strided_slice %66 {offsets = [0, 0, 16], sizes = [2, 8, 16], strides = [1, 1, 1]} : vector<2x8x64xf32> to vector<2x8x16xf32>
    %86 = vector.extract_strided_slice %67 {offsets = [0, 0, 16], sizes = [2, 16, 16], strides = [1, 1, 1]} : vector<2x16x64xf32> to vector<2x16x16xf32>
    %87 = vector.extract_strided_slice %68 {offsets = [0, 0, 16], sizes = [2, 16, 16], strides = [1, 1, 1]} : vector<2x16x64xf32> to vector<2x16x16xf32>
    "tpu.trace_start"() <{level = 10 : i32, message = "bqd,bkd->bqk"}> : () -> ()
    %cst_38 = arith.constant dense<0.000000e+00> : vector<2x8x16xf32>
    %88 = tpu.matmul %85, %86, %cst_38 {dimension_numbers = #tpu.dot_dimension_numbers<[2], [2], [1], [1], [0, 0, 0, 1, 1, 1], [0], [0]>} : vector<2x8x16xf32>, vector<2x16x16xf32>, vector<2x8x16xf32> -> vector<2x8x16xf32>
    "tpu.trace_stop"() : () -> ()
    %cst_39 = arith.constant dense<0xFF800000> : vector<2x8xf32>
    %89 = vector.multi_reduction <maximumf>, %88, %cst_39 [2] : vector<2x8x16xf32> to vector<2x8xf32>
    %90 = vector.shape_cast %89 : vector<2x8xf32> to vector<2x8x1xf32>
    %91 = vector.broadcast %90 : vector<2x8x1xf32> to vector<2x8x16xf32>
    %92 = arith.subf %88, %91 : vector<2x8x16xf32>
    %93 = math.exp %92 : vector<2x8x16xf32>
    %cst_40 = arith.constant dense<0.000000e+00> : vector<2x8xf32>
    %94 = vector.multi_reduction <add>, %93, %cst_40 [2] : vector<2x8x16xf32> to vector<2x8xf32>
    %95 = vector.shape_cast %94 : vector<2x8xf32> to vector<2x8x1xf32>
    %96 = tpu.reciprocal %95 {approx = true} : vector<2x8x1xf32> -> vector<2x8x1xf32>
    %97 = vector.broadcast %96 : vector<2x8x1xf32> to vector<2x8x16xf32>
    %98 = arith.mulf %93, %97 : vector<2x8x16xf32>
    "tpu.trace_start"() <{level = 10 : i32, message = "bqk,bkd->bqd"}> : () -> ()
    %cst_41 = arith.constant dense<0.000000e+00> : vector<2x8x16xf32>
    %99 = tpu.matmul %98, %87, %cst_41 {dimension_numbers = #tpu.dot_dimension_numbers<[2], [1], [1], [2], [0, 0, 0, 1, 1, 2], [0], [0]>} : vector<2x8x16xf32>, vector<2x16x16xf32>, vector<2x8x16xf32> -> vector<2x8x16xf32>
    "tpu.trace_stop"() : () -> ()
    %c0_42 = arith.constant 0 : index
    %c0_43 = arith.constant 0 : index
    %c16 = arith.constant 16 : index
    %100 = vector.load %arg12[%c0_42, %c0_43, %c16] : memref<2x8x64xf32, #tpu.memory_space<vmem>>, vector<2x8x16xf32>
    tpu.vector_store %arg12[%c0_42, %c0_43, %c16], %99 {strides = array<i32>} : memref<2x8x64xf32, #tpu.memory_space<vmem>>, vector<2x8x16xf32>,
    %101 = vector.extract_strided_slice %66 {offsets = [0, 0, 32], sizes = [2, 8, 16], strides = [1, 1, 1]} : vector<2x8x64xf32> to vector<2x8x16xf32>
    %102 = vector.extract_strided_slice %67 {offsets = [0, 0, 32], sizes = [2, 16, 16], strides = [1, 1, 1]} : vector<2x16x64xf32> to vector<2x16x16xf32>
    %103 = vector.extract_strided_slice %68 {offsets = [0, 0, 32], sizes = [2, 16, 16], strides = [1, 1, 1]} : vector<2x16x64xf32> to vector<2x16x16xf32>
    "tpu.trace_start"() <{level = 10 : i32, message = "bqd,bkd->bqk"}> : () -> ()
    %cst_44 = arith.constant dense<0.000000e+00> : vector<2x8x16xf32>
    %104 = tpu.matmul %101, %102, %cst_44 {dimension_numbers = #tpu.dot_dimension_numbers<[2], [2], [1], [1], [0, 0, 0, 1, 1, 1], [0], [0]>} : vector<2x8x16xf32>, vector<2x16x16xf32>, vector<2x8x16xf32> -> vector<2x8x16xf32>
    "tpu.trace_stop"() : () -> ()
    %cst_45 = arith.constant dense<0xFF800000> : vector<2x8xf32>
    %105 = vector.multi_reduction <maximumf>, %104, %cst_45 [2] : vector<2x8x16xf32> to vector<2x8xf32>
    %106 = vector.shape_cast %105 : vector<2x8xf32> to vector<2x8x1xf32>
    %107 = vector.broadcast %106 : vector<2x8x1xf32> to vector<2x8x16xf32>
    %108 = arith.subf %104, %107 : vector<2x8x16xf32>
    %109 = math.exp %108 : vector<2x8x16xf32>
    %cst_46 = arith.constant dense<0.000000e+00> : vector<2x8xf32>
    %110 = vector.multi_reduction <add>, %109, %cst_46 [2] : vector<2x8x16xf32> to vector<2x8xf32>
    %111 = vector.shape_cast %110 : vector<2x8xf32> to vector<2x8x1xf32>
    %112 = tpu.reciprocal %111 {approx = true} : vector<2x8x1xf32> -> vector<2x8x1xf32>
    %113 = vector.broadcast %112 : vector<2x8x1xf32> to vector<2x8x16xf32>
    %114 = arith.mulf %109, %113 : vector<2x8x16xf32>
    "tpu.trace_start"() <{level = 10 : i32, message = "bqk,bkd->bqd"}> : () -> ()
    %cst_47 = arith.constant dense<0.000000e+00> : vector<2x8x16xf32>
    %115 = tpu.matmul %114, %103, %cst_47 {dimension_numbers = #tpu.dot_dimension_numbers<[2], [1], [1], [2], [0, 0, 0, 1, 1, 2], [0], [0]>} : vector<2x8x16xf32>, vector<2x16x16xf32>, vector<2x8x16xf32> -> vector<2x8x16xf32>
    "tpu.trace_stop"() : () -> ()
    %c0_48 = arith.constant 0 : index
    %c0_49 = arith.constant 0 : index
    %c32 = arith.constant 32 : index
    %116 = vector.load %arg12[%c0_48, %c0_49, %c32] : memref<2x8x64xf32, #tpu.memory_space<vmem>>, vector<2x8x16xf32>
    tpu.vector_store %arg12[%c0_48, %c0_49, %c32], %115 {strides = array<i32>} : memref<2x8x64xf32, #tpu.memory_space<vmem>>, vector<2x8x16xf32>,
    %117 = vector.extract_strided_slice %66 {offsets = [0, 0, 48], sizes = [2, 8, 16], strides = [1, 1, 1]} : vector<2x8x64xf32> to vector<2x8x16xf32>
    %118 = vector.extract_strided_slice %67 {offsets = [0, 0, 48], sizes = [2, 16, 16], strides = [1, 1, 1]} : vector<2x16x64xf32> to vector<2x16x16xf32>
    %119 = vector.extract_strided_slice %68 {offsets = [0, 0, 48], sizes = [2, 16, 16], strides = [1, 1, 1]} : vector<2x16x64xf32> to vector<2x16x16xf32>
    "tpu.trace_start"() <{level = 10 : i32, message = "bqd,bkd->bqk"}> : () -> ()
    %cst_50 = arith.constant dense<0.000000e+00> : vector<2x8x16xf32>
    %120 = tpu.matmul %117, %118, %cst_50 {dimension_numbers = #tpu.dot_dimension_numbers<[2], [2], [1], [1], [0, 0, 0, 1, 1, 1], [0], [0]>} : vector<2x8x16xf32>, vector<2x16x16xf32>, vector<2x8x16xf32> -> vector<2x8x16xf32>
    "tpu.trace_stop"() : () -> ()
    %cst_51 = arith.constant dense<0xFF800000> : vector<2x8xf32>
    %121 = vector.multi_reduction <maximumf>, %120, %cst_51 [2] : vector<2x8x16xf32> to vector<2x8xf32>
    %122 = vector.shape_cast %121 : vector<2x8xf32> to vector<2x8x1xf32>
    %123 = vector.broadcast %122 : vector<2x8x1xf32> to vector<2x8x16xf32>
    %124 = arith.subf %120, %123 : vector<2x8x16xf32>
    %125 = math.exp %124 : vector<2x8x16xf32>
    %cst_52 = arith.constant dense<0.000000e+00> : vector<2x8xf32>
    %126 = vector.multi_reduction <add>, %125, %cst_52 [2] : vector<2x8x16xf32> to vector<2x8xf32>
    %127 = vector.shape_cast %126 : vector<2x8xf32> to vector<2x8x1xf32>
    %128 = tpu.reciprocal %127 {approx = true} : vector<2x8x1xf32> -> vector<2x8x1xf32>
    %129 = vector.broadcast %128 : vector<2x8x1xf32> to vector<2x8x16xf32>
    %130 = arith.mulf %125, %129 : vector<2x8x16xf32>
    "tpu.trace_start"() <{level = 10 : i32, message = "bqk,bkd->bqd"}> : () -> ()
    %cst_53 = arith.constant dense<0.000000e+00> : vector<2x8x16xf32>
    %131 = tpu.matmul %130, %119, %cst_53 {dimension_numbers = #tpu.dot_dimension_numbers<[2], [1], [1], [2], [0, 0, 0, 1, 1, 2], [0], [0]>} : vector<2x8x16xf32>, vector<2x16x16xf32>, vector<2x8x16xf32> -> vector<2x8x16xf32>
    "tpu.trace_stop"() : () -> ()
    %c0_54 = arith.constant 0 : index
    %c0_55 = arith.constant 0 : index
    %c48 = arith.constant 48 : index
    %132 = vector.load %arg12[%c0_54, %c0_55, %c48] : memref<2x8x64xf32, #tpu.memory_space<vmem>>, vector<2x8x16xf32>
    tpu.vector_store %arg12[%c0_54, %c0_55, %c48], %131 {strides = array<i32>} : memref<2x8x64xf32, #tpu.memory_space<vmem>>, vector<2x8x16xf32>,
    %c0_56 = arith.constant 0 : index
    %c0_57 = arith.constant 0 : index
    %c0_58 = arith.constant 0 : index
    %133 = vector.load %arg12[%c0_56, %c0_57, %c0_58] : memref<2x8x64xf32, #tpu.memory_space<vmem>>, vector<2x8x64xf32>
    %134 = vector.shape_cast %133 : vector<2x8x64xf32> to vector<16x64xf32>
    %c0_59 = arith.constant 0 : index
    %c0_60 = arith.constant 0 : index
    %135 = vector.load %arg10[%c0_59, %c0_60] : memref<64x32xf32, #tpu.memory_space<vmem>>, vector<64x32xf32>
    %cst_61 = arith.constant dense<0.000000e+00> : vector<16x32xf32>
    %136 = tpu.matmul %134, %135, %cst_61 {dimension_numbers = #tpu.dot_dimension_numbers<[1], [0], [0], [1], [0, 0, 1, 1], [], []>} : vector<16x64xf32>, vector<64x32xf32>, vector<16x32xf32> -> vector<16x32xf32>
    %137 = vector.shape_cast %136 : vector<16x32xf32> to vector<2x8x32xf32>
    %c0_62 = arith.constant 0 : index
    %c0_63 = arith.constant 0 : index
    %c0_64 = arith.constant 0 : index
    %138 = vector.load %arg11[%c0_62, %c0_63, %c0_64] : memref<2x8x32xf32, #tpu.memory_space<vmem>>, vector<2x8x32xf32>
    tpu.vector_store %arg11[%c0_62, %c0_63, %c0_64], %137 {strides = array<i32>} : memref<2x8x32xf32, #tpu.memory_space<vmem>>, vector<2x8x32xf32>,
    return
  }
  func.func @transform_0(%arg0: i32) -> (i32, i32, i32) {
    %c0_i32 = arith.constant 0 : i32
    %c0_i32_0 = arith.constant 0 : i32
    %c0_i32_1 = arith.constant 0 : i32
    return %arg0, %c0_i32, %c0_i32_0 : i32, i32, i32
  }
  func.func @transform_1(%arg0: i32) -> (i32, i32, i32) {
    %c0_i32 = arith.constant 0 : i32
    %c0_i32_0 = arith.constant 0 : i32
    %c0_i32_1 = arith.constant 0 : i32
    return %arg0, %c0_i32, %c0_i32_0 : i32, i32, i32
  }
  func.func @transform_2(%arg0: i32) -> (i32, i32) {
    %c0_i32 = arith.constant 0 : i32
    %c0_i32_0 = arith.constant 0 : i32
    %c0_i32_1 = arith.constant 0 : i32
    return %c0_i32, %c0_i32_0 : i32, i32
  }
  func.func @transform_3(%arg0: i32) -> (i32, i32) {
    %c0_i32 = arith.constant 0 : i32
    %c0_i32_0 = arith.constant 0 : i32
    %c0_i32_1 = arith.constant 0 : i32
    return %c0_i32, %c0_i32_0 : i32, i32
  }
  func.func @transform_4(%arg0: i32) -> (i32, i32) {
    %c0_i32 = arith.constant 0 : i32
    %c0_i32_0 = arith.constant 0 : i32
    %c0_i32_1 = arith.constant 0 : i32
    return %c0_i32, %c0_i32_0 : i32, i32
  }
  func.func @transform_5(%arg0: i32) -> (i32, i32) {
    %c0_i32 = arith.constant 0 : i32
    %c0_i32_0 = arith.constant 0 : i32
    %c0_i32_1 = arith.constant 0 : i32
    return %c0_i32, %c0_i32_0 : i32, i32
  }
  func.func @transform_6(%arg0: i32) -> (i32, i32) {
    %c0_i32 = arith.constant 0 : i32
    %c0_i32_0 = arith.constant 0 : i32
    %c0_i32_1 = arith.constant 0 : i32
    return %c0_i32, %c0_i32_0 : i32, i32
  }
  func.func @transform_7(%arg0: i32) -> (i32, i32) {
    %c0_i32 = arith.constant 0 : i32
    %c0_i32_0 = arith.constant 0 : i32
    %c0_i32_1 = arith.constant 0 : i32
    return %c0_i32, %c0_i32_0 : i32, i32
  }
  func.func @transform_8(%arg0: i32) -> (i32, i32) {
    %c0_i32 = arith.constant 0 : i32
    %c0_i32_0 = arith.constant 0 : i32
    %c0_i32_1 = arith.constant 0 : i32
    return %c0_i32, %c0_i32_0 : i32, i32
  }
  func.func @transform_9(%arg0: i32) -> (i32, i32) {
    %c0_i32 = arith.constant 0 : i32
    %c0_i32_0 = arith.constant 0 : i32
    %c0_i32_1 = arith.constant 0 : i32
    return %c0_i32, %c0_i32_0 : i32, i32
  }
  func.func @transform_10(%arg0: i32) -> (i32, i32, i32) {
    %c0_i32 = arith.constant 0 : i32
    %c0_i32_0 = arith.constant 0 : i32
    %c0_i32_1 = arith.constant 0 : i32
    return %arg0, %c0_i32, %c0_i32_0 : i32, i32, i32
  }
}

</mosaic_0001>

<llo_original>
// kernel: tpu_custom_call.1
$region0: #{tpu_custom_call.1}
  #allocation0 [shape = 'u32[]', space=smem, size = 0x4, offset = 0x4, fixed_abs, tag = 'smem constant byte address 0x4 - core index']
  #allocation1 [shape = 'u32[144,128]{1,0:T(1,128)}', space=vmem, size = 0x12000, scoped, tag = 'internal scratch']
  #allocation2 [shape = 'f32[2,8,64]{2,1,0:T(8,128)}', space=vmem, size = 0x2000, scoped, tag = 'scratch operand']
  %s0 = inlined_call_operand.vmem [shape: f32[4,16,32], index: 0, kind: input, shape index: {}]
  %s1 = inlined_call_operand.vmem [shape: f32[4,8,32], index: 1, kind: input, shape index: {}]
  %s2 = inlined_call_operand.vmem [shape: f32[1,32], index: 2, kind: input, shape index: {}]
  %s3 = inlined_call_operand.vmem [shape: f32[1,32], index: 3, kind: input, shape index: {}]
  %s4 = inlined_call_operand.hbm [shape: f32[1,32], index: 4, kind: input, shape index: {}]
  %s5 = inlined_call_operand.hbm [shape: f32[1,32], index: 5, kind: input, shape index: {}]
  %s6 = inlined_call_operand.hbm [shape: f32[32,64], index: 6, kind: input, shape index: {}]
  %s7 = inlined_call_operand.hbm [shape: f32[32,64], index: 7, kind: input, shape index: {}]
  %s8 = inlined_call_operand.hbm [shape: f32[32,64], index: 8, kind: input, shape index: {}]
  %s9 = inlined_call_operand.vmem [shape: f32[64,32], index: 9, kind: input, shape index: {}]
  %s10 = inlined_call_operand.hbm [shape: f32[4,8,32], index: 10, kind: output, shape index: {}]
  %s11 = sld [smem:[#allocation0]]
  $region93: #{tpu_custom_call.1} parent=0
    _
  %s13 = ssub.s32 1, %s11
  %s14 = scalar_select 0, %s13, %s11
  $region1: #{tpu_custom_call.1} parent=0
    #allocation3 [shape = 'u8[512]{0}', space=vmem, size = 0x400, scoped, tag = 'input window, operand 4, single buffered']
    #allocation4 [shape = 's32[2]{0}', space=sflag, size = 0x8, scoped, tag = 'scoped memory for tpu_custom_call.1']
    #allocation5 [shape = 's32[2]{0}', space=sflag, size = 0x8, scoped, tag = 'scoped memory for tpu_custom_call.1']
    #allocation6 [shape = 'u8[512]{0}', space=vmem, size = 0x400, scoped, tag = 'input window, operand 5, single buffered']
    #allocation7 [shape = 's32[1]{0}', space=sflag, size = 0x4, scoped, tag = 'scoped memory for tpu_custom_call.1']
    #allocation8 [shape = 'u8[16384]{0}', space=vmem, size = 0x4000, scoped, tag = 'input window, operand 6, single buffered']
    #allocation9 [shape = 'u8[16384]{0}', space=vmem, size = 0x4000, scoped, tag = 'input window, operand 7, single buffered']
    #allocation10 [shape = 's32[1]{0}', space=sflag, size = 0x4, scoped, tag = 'scoped memory for tpu_custom_call.1']
    #allocation11 [shape = 'u8[16384]{0}', space=vmem, size = 0x4000, scoped, tag = 'input window, operand 8, single buffered']
    #allocation12 [shape = 'u8[16384]{0}', space=vmem, size = 0x4000, scoped, tag = 'output window, operand 0']
    %15 = vsyncpa [#allocation4], 0
    %16 = vsyncpa [#allocation7], 0
    %17 = vsyncpa [#allocation10], 0
    %18 = vsyncpa [#allocation5], 0
    %s19 = scalar_lea.sflag [#allocation5], 1
    %20 = vsyncpa %s19, 0
    loop: start=0, step=1, limit=4
    $region2: #{tpu_custom_call.1} parent=1 // loop_pre_header
      _
    $region3: #{tpu_custom_call.1} parent=1 // loop_header
      %s22 = sphi 0, %s26
      %p23 = scmp.ge.s32.totalorder %s22, 4
      %s32 = sphi 0, %s34
      %s35 = sphi 0, %s32
      %s36 = sphi 0, %s35
      %s52 = sphi 0, %s36
      %s58 = sphi 0, %s60
      %s61 = sphi 0, %s58
      %s62 = sphi 0, %s61
      %s78 = sphi 0, %s62
      %s82 = sphi 0, %s82
      %s84 = sphi 0, %s82
      %s85 = sphi 0, %s84
      %s99 = sphi 0, %s85
      %s103 = sphi 0, %s103
      %s105 = sphi 0, %s103
      %s106 = sphi 0, %s105
      %s120 = sphi 0, %s106
      %s124 = sphi 0, %s124
      %s126 = sphi 0, %s124
      %s127 = sphi 0, %s126
      %s141 = sphi 0, %s127
      %s145 = sphi 0, %s145
      %s147 = sphi 0, %s145
      %s148 = sphi 0, %s147
      %s162 = sphi 0, %s148
      %s166 = sphi 0, %s166
      %s168 = sphi 0, %s166
      %s169 = sphi 0, %s168
      %s183 = sphi 0, %s169
      %s187 = sphi 0, %s187
      %s189 = sphi 0, %s187
      %s190 = sphi 0, %s189
      %s204 = sphi 0, %s190
      %s208 = sphi 0, %s208
      %s210 = sphi 0, %s208
      %s211 = sphi 0, %s210
      %s225 = sphi 0, %s211
      %s229 = sphi 0, %s229
      %s231 = sphi 0, %s229
      %s232 = sphi 0, %s231
      %s246 = sphi 0, %s232
      %s252 = sphi 0, %s254
      %s255 = sphi 0, %s252
      %s256 = sphi 0, %s255
      %s272 = sphi 0, %s256
    $region4: #{tpu_custom_call.1} parent=1 // loop_header_branch
      %25 = sbr.rel (%p23) target = $region8
    $region5: #{tpu_custom_call.1} parent=1 // loop_body
      %s27 = ssub.s32 %s22, 1
      %s28 = ssub.s32 %s22, 2
      %s29 = sadd.s32 %s22, 1
      %s30 = ssub.s32 %s22, %s29
      %p31 = scmp.eq.s32.totalorder %s30, 0
      %s33 = sadd.s32 %s32, 1
      %s34 = scalar_select %p31, %s32, %s33
      %p37 = pneg %p31
      %p38 = scmp.eq.s32.totalorder %s22, 1
      %p39 = por %p37, %p38
      %p40 = scmp.ne.s32.totalorder %s32, %s35
      %p41 = scmp.eq.s32.totalorder %s22, 0
      %p42 = por %p40, %p41
      %p43 = scmp.ne.s32.totalorder %s32, %s35
      %p44 = scmp.eq.s32.totalorder %s27, 1
      %p45 = por %p43, %p44
      %p46 = scmp.ne.s32.totalorder %s35, %s36
      %p47 = scmp.eq.s32.totalorder %s27, 0
      %p48 = por %p46, %p47
      %p49 = scmp.ne.s32.totalorder %s35, %s36
      %p50 = scmp.eq.s32.totalorder %s28, 1
      %p51 = por %p49, %p50
      %p53 = scmp.ne.s32.totalorder %s36, %s52
      %p54 = scmp.eq.s32.totalorder %s28, 0
      %p55 = por %p53, %p54
      %s56 = ssub.s32 %s22, %s29
      %p57 = scmp.eq.s32.totalorder %s56, 0
      %s59 = sadd.s32 %s58, 1
      %s60 = scalar_select %p57, %s58, %s59
      %p63 = pneg %p57
      %p64 = scmp.eq.s32.totalorder %s22, 1
      %p65 = por %p63, %p64
      %p66 = scmp.ne.s32.totalorder %s58, %s61
      %p67 = scmp.eq.s32.totalorder %s22, 0
      %p68 = por %p66, %p67
      %p69 = scmp.ne.s32.totalorder %s58, %s61
      %p70 = scmp.eq.s32.totalorder %s27, 1
      %p71 = por %p69, %p70
      %p72 = scmp.ne.s32.totalorder %s61, %s62
      %p73 = scmp.eq.s32.totalorder %s27, 0
      %p74 = por %p72, %p73
      %p75 = scmp.ne.s32.totalorder %s61, %s62
      %p76 = scmp.eq.s32.totalorder %s28, 1
      %p77 = por %p75, %p76
      %p79 = scmp.ne.s32.totalorder %s62, %s78
      %p80 = scmp.eq.s32.totalorder %s28, 0
      %p81 = por %p79, %p80
      %s83 = sadd.s32 %s82, 1
      %p86 = scmp.eq.s32.totalorder %s22, 1
      %p87 = scmp.ne.s32.totalorder %s82, %s84
      %p88 = scmp.eq.s32.totalorder %s22, 0
      %p89 = por %p87, %p88
      %p90 = scmp.ne.s32.totalorder %s82, %s84
      %p91 = scmp.eq.s32.totalorder %s27, 1
      %p92 = por %p90, %p91
      %p93 = scmp.ne.s32.totalorder %s84, %s85
      %p94 = scmp.eq.s32.totalorder %s27, 0
      %p95 = por %p93, %p94
      %p96 = scmp.ne.s32.totalorder %s84, %s85
      %p97 = scmp.eq.s32.totalorder %s28, 1
      %p98 = por %p96, %p97
      %p100 = scmp.ne.s32.totalorder %s85, %s99
      %p101 = scmp.eq.s32.totalorder %s28, 0
      %p102 = por %p100, %p101
      %s104 = sadd.s32 %s103, 1
      %p107 = scmp.eq.s32.totalorder %s22, 1
      %p108 = scmp.ne.s32.totalorder %s103, %s105
      %p109 = scmp.eq.s32.totalorder %s22, 0
      %p110 = por %p108, %p109
      %p111 = scmp.ne.s32.totalorder %s103, %s105
      %p112 = scmp.eq.s32.totalorder %s27, 1
      %p113 = por %p111, %p112
      %p114 = scmp.ne.s32.totalorder %s105, %s106
      %p115 = scmp.eq.s32.totalorder %s27, 0
      %p116 = por %p114, %p115
      %p117 = scmp.ne.s32.totalorder %s105, %s106
      %p118 = scmp.eq.s32.totalorder %s28, 1
      %p119 = por %p117, %p118
      %p121 = scmp.ne.s32.totalorder %s106, %s120
      %p122 = scmp.eq.s32.totalorder %s28, 0
      %p123 = por %p121, %p122
      %s125 = sadd.s32 %s124, 1
      %p128 = scmp.eq.s32.totalorder %s22, 1
      %p129 = scmp.ne.s32.totalorder %s124, %s126
      %p130 = scmp.eq.s32.totalorder %s22, 0
      %p131 = por %p129, %p130
      %p132 = scmp.ne.s32.totalorder %s124, %s126
      %p133 = scmp.eq.s32.totalorder %s27, 1
      %p134 = por %p132, %p133
      %p135 = scmp.ne.s32.totalorder %s126, %s127
      %p136 = scmp.eq.s32.totalorder %s27, 0
      %p137 = por %p135, %p136
      %p138 = scmp.ne.s32.totalorder %s126, %s127
      %p139 = scmp.eq.s32.totalorder %s28, 1
      %p140 = por %p138, %p139
      %p142 = scmp.ne.s32.totalorder %s127, %s141
      %p143 = scmp.eq.s32.totalorder %s28, 0
      %p144 = por %p142, %p143
      %s146 = sadd.s32 %s145, 1
      %p149 = scmp.eq.s32.totalorder %s22, 1
      %p150 = scmp.ne.s32.totalorder %s145, %s147
      %p151 = scmp.eq.s32.totalorder %s22, 0
      %p152 = por %p150, %p151
      %p153 = scmp.ne.s32.totalorder %s145, %s147
      %p154 = scmp.eq.s32.totalorder %s27, 1
      %p155 = por %p153, %p154
      %p156 = scmp.ne.s32.totalorder %s147, %s148
      %p157 = scmp.eq.s32.totalorder %s27, 0
      %p158 = por %p156, %p157
      %p159 = scmp.ne.s32.totalorder %s147, %s148
      %p160 = scmp.eq.s32.totalorder %s28, 1
      %p161 = por %p159, %p160
      %p163 = scmp.ne.s32.totalorder %s148, %s162
      %p164 = scmp.eq.s32.totalorder %s28, 0
      %p165 = por %p163, %p164
      %s167 = sadd.s32 %s166, 1
      %p170 = scmp.eq.s32.totalorder %s22, 1
      %p171 = scmp.ne.s32.totalorder %s166, %s168
      %p172 = scmp.eq.s32.totalorder %s22, 0
      %p173 = por %p171, %p172
      %p174 = scmp.ne.s32.totalorder %s166, %s168
      %p175 = scmp.eq.s32.totalorder %s27, 1
      %p176 = por %p174, %p175
      %p177 = scmp.ne.s32.totalorder %s168, %s169
      %p178 = scmp.eq.s32.totalorder %s27, 0
      %p179 = por %p177, %p178
      %p180 = scmp.ne.s32.totalorder %s168, %s169
      %p181 = scmp.eq.s32.totalorder %s28, 1
      %p182 = por %p180, %p181
      %p184 = scmp.ne.s32.totalorder %s169, %s183
      %p185 = scmp.eq.s32.totalorder %s28, 0
      %p186 = por %p184, %p185
      %s188 = sadd.s32 %s187, 1
      %p191 = scmp.eq.s32.totalorder %s22, 1
      %p192 = scmp.ne.s32.totalorder %s187, %s189
      %p193 = scmp.eq.s32.totalorder %s22, 0
      %p194 = por %p192, %p193
      %p195 = scmp.ne.s32.totalorder %s187, %s189
      %p196 = scmp.eq.s32.totalorder %s27, 1
      %p197 = por %p195, %p196
      %p198 = scmp.ne.s32.totalorder %s189, %s190
      %p199 = scmp.eq.s32.totalorder %s27, 0
      %p200 = por %p198, %p199
      %p201 = scmp.ne.s32.totalorder %s189, %s190
      %p202 = scmp.eq.s32.totalorder %s28, 1
      %p203 = por %p201, %p202
      %p205 = scmp.ne.s32.totalorder %s190, %s204
      %p206 = scmp.eq.s32.totalorder %s28, 0
      %p207 = por %p205, %p206
      %s209 = sadd.s32 %s208, 1
      %p212 = scmp.eq.s32.totalorder %s22, 1
      %p213 = scmp.ne.s32.totalorder %s208, %s210
      %p214 = scmp.eq.s32.totalorder %s22, 0
      %p215 = por %p213, %p214
      %p216 = scmp.ne.s32.totalorder %s208, %s210
      %p217 = scmp.eq.s32.totalorder %s27, 1
      %p218 = por %p216, %p217
      %p219 = scmp.ne.s32.totalorder %s210, %s211
      %p220 = scmp.eq.s32.totalorder %s27, 0
      %p221 = por %p219, %p220
      %p222 = scmp.ne.s32.totalorder %s210, %s211
      %p223 = scmp.eq.s32.totalorder %s28, 1
      %p224 = por %p222, %p223
      %p226 = scmp.ne.s32.totalorder %s211, %s225
      %p227 = scmp.eq.s32.totalorder %s28, 0
      %p228 = por %p226, %p227
      %s230 = sadd.s32 %s229, 1
      %p233 = scmp.eq.s32.totalorder %s22, 1
      %p234 = scmp.ne.s32.totalorder %s229, %s231
      %p235 = scmp.eq.s32.totalorder %s22, 0
      %p236 = por %p234, %p235
      %p237 = scmp.ne.s32.totalorder %s229, %s231
      %p238 = scmp.eq.s32.totalorder %s27, 1
      %p239 = por %p237, %p238
      %p240 = scmp.ne.s32.totalorder %s231, %s232
      %p241 = scmp.eq.s32.totalorder %s27, 0
      %p242 = por %p240, %p241
      %p243 = scmp.ne.s32.totalorder %s231, %s232
      %p244 = scmp.eq.s32.totalorder %s28, 1
      %p245 = por %p243, %p244
      %p247 = scmp.ne.s32.totalorder %s232, %s246
      %p248 = scmp.eq.s32.totalorder %s28, 0
      %p249 = por %p247, %p248
      %s250 = ssub.s32 %s22, %s29
      %p251 = scmp.eq.s32.totalorder %s250, 0
      %s253 = sadd.s32 %s252, 1
      %s254 = scalar_select %p251, %s252, %s253
      %p257 = pneg %p251
      %p258 = scmp.eq.s32.totalorder %s22, 1
      %p259 = por %p257, %p258
      %p260 = scmp.ne.s32.totalorder %s252, %s255
      %p261 = scmp.eq.s32.totalorder %s22, 0
      %p262 = por %p260, %p261
      %p263 = scmp.ne.s32.totalorder %s252, %s255
      %p264 = scmp.eq.s32.totalorder %s27, 1
      %p265 = por %p263, %p264
      %p266 = scmp.ne.s32.totalorder %s255, %s256
      %p267 = scmp.eq.s32.totalorder %s27, 0
      %p268 = por %p266, %p267
      %p269 = scmp.ne.s32.totalorder %s255, %s256
      %p270 = scmp.eq.s32.totalorder %s28, 1
      %p271 = por %p269, %p270
      %p273 = scmp.ne.s32.totalorder %s256, %s272
      %p274 = scmp.eq.s32.totalorder %s28, 0
      %p275 = por %p273, %p274
      %p276 = scmp.le.s32.totalorder 1, %s22
      %p277 = scmp.lt.s32.totalorder %s22, 3
      %p278 = pnand %p276, %p277
      %p279 = pneg %p278
      // Predicated region
      $region9: #{tpu_custom_call.1} parent=5 // pred_check
        _
      $region10: #{tpu_custom_call.1} parent=5 // pred_check_branch
        %281 = sbr.rel (%p278) target = $region12
      $region11: #{tpu_custom_call.1} parent=5 // pred_region
        %s282 = ssub.s32 %s22, 1
        // Predicated region
        $region13: #{tpu_custom_call.1} parent=11 // pred_check
          %p283 = pneg %p95
        $region14: #{tpu_custom_call.1} parent=11 // pred_check_branch
          %285 = sbr.rel (%p283) target = $region16
        $region15: #{tpu_custom_call.1} parent=11 // pred_region
          _
        $region16: #{tpu_custom_call.1} parent=11 // pred_fallthru
          _
        // Predicated region
        $region17: #{tpu_custom_call.1} parent=11 // pred_check
          %p286 = pneg %p116
        $region18: #{tpu_custom_call.1} parent=11 // pred_check_branch
          %288 = sbr.rel (%p286) target = $region20
        $region19: #{tpu_custom_call.1} parent=11 // pred_region
          _
        $region20: #{tpu_custom_call.1} parent=11 // pred_fallthru
          _
        // Predicated region
        $region21: #{tpu_custom_call.1} parent=11 // pred_check
          %p289 = pneg %p137
        $region22: #{tpu_custom_call.1} parent=11 // pred_check_branch
          %291 = sbr.rel (%p289) target = $region24
        $region23: #{tpu_custom_call.1} parent=11 // pred_region
          %s293 = ssub.s32 16, 16
          %294 = vsyncadd [#allocation4], %s293
          %s296 = sshll.u32 [#allocation3], 4
          %s297 = int_to_ptr.vmem [resolvable:$true] %s296
          %299 = dma.hbm_to_vmem [thread:$0]  %s4, 16, %s297, [#allocation4]
        $region24: #{tpu_custom_call.1} parent=11 // pred_fallthru
          _
        // Predicated region
        $region25: #{tpu_custom_call.1} parent=11 // pred_check
          %p300 = pneg %p158
        $region26: #{tpu_custom_call.1} parent=11 // pred_check_branch
          %302 = sbr.rel (%p300) target = $region28
        $region27: #{tpu_custom_call.1} parent=11 // pred_region
          %s304 = ssub.s32 16, 16
          %305 = vsyncadd [#allocation7], %s304
          %s307 = sshll.u32 [#allocation6], 4
          %s308 = int_to_ptr.vmem [resolvable:$true] %s307
          %310 = dma.hbm_to_vmem [thread:$0]  %s5, 16, %s308, [#allocation7]
        $region28: #{tpu_custom_call.1} parent=11 // pred_fallthru
          _
        // Predicated region
        $region29: #{tpu_custom_call.1} parent=11 // pred_check
          %p311 = pneg %p179
        $region30: #{tpu_custom_call.1} parent=11 // pred_check_branch
          %313 = sbr.rel (%p311) target = $region32
        $region31: #{tpu_custom_call.1} parent=11 // pred_region
          %s315 = ssub.s32 512, 512
          %316 = vsyncadd [#allocation7], %s315
          %s317 = sshll.u32 [#allocation8], 4
          %s318 = int_to_ptr.vmem [resolvable:$true] %s317
          %323 = dma.hbm_to_vmem [thread:$0]  %s6, 512, %s318, [#allocation7], 128, 128, 8
        $region32: #{tpu_custom_call.1} parent=11 // pred_fallthru
          _
        // Predicated region
        $region33: #{tpu_custom_call.1} parent=11 // pred_check
          %p324 = pneg %p200
        $region34: #{tpu_custom_call.1} parent=11 // pred_check_branch
          %326 = sbr.rel (%p324) target = $region36
        $region35: #{tpu_custom_call.1} parent=11 // pred_region
          %s328 = ssub.s32 512, 512
          %329 = vsyncadd [#allocation10], %s328
          %s330 = sshll.u32 [#allocation9], 4
          %s331 = int_to_ptr.vmem [resolvable:$true] %s330
          %336 = dma.hbm_to_vmem [thread:$0]  %s7, 512, %s331, [#allocation10], 128, 128, 8
        $region36: #{tpu_custom_call.1} parent=11 // pred_fallthru
          _
        // Predicated region
        $region37: #{tpu_custom_call.1} parent=11 // pred_check
          %p337 = pneg %p221
        $region38: #{tpu_custom_call.1} parent=11 // pred_check_branch
          %339 = sbr.rel (%p337) target = $region40
        $region39: #{tpu_custom_call.1} parent=11 // pred_region
          %s341 = ssub.s32 512, 512
          %342 = vsyncadd [#allocation10], %s341
          %s343 = sshll.u32 [#allocation11], 4
          %s344 = int_to_ptr.vmem [resolvable:$true] %s343
          %349 = dma.hbm_to_vmem [thread:$0]  %s8, 512, %s344, [#allocation10], 128, 128, 8
        $region40: #{tpu_custom_call.1} parent=11 // pred_fallthru
          _
        // Predicated region
        $region41: #{tpu_custom_call.1} parent=11 // pred_check
          %p350 = pneg %p242
        $region42: #{tpu_custom_call.1} parent=11 // pred_check_branch
          %352 = sbr.rel (%p350) target = $region44
        $region43: #{tpu_custom_call.1} parent=11 // pred_region
          _
        $region44: #{tpu_custom_call.1} parent=11 // pred_fallthru
          _
      $region12: #{tpu_custom_call.1} parent=5 // pred_fallthru
        _
      %p353 = scmp.lt.s32.totalorder %s22, 2
      // Predicated region
      $region45: #{tpu_custom_call.1} parent=5 // pred_check
        %p354 = pneg %p353
      $region46: #{tpu_custom_call.1} parent=5 // pred_check_branch
        %356 = sbr.rel (%p354) target = $region48
      $region47: #{tpu_custom_call.1} parent=5 // pred_region
        // Predicated region
        $region49: #{tpu_custom_call.1} parent=47 // pred_check
          %p357 = pneg %p42
        $region50: #{tpu_custom_call.1} parent=47 // pred_check_branch
          %359 = sbr.rel (%p357) target = $region52
        $region51: #{tpu_custom_call.1} parent=47 // pred_region
          %s360 = smul.u32 2, %s22
          %p361 = scmp.lt.s32.totalorder %s360, 3
          %s362 = scalar_select %p361, %s360, 3
          %s363 = smul.addr %s362, 2
          %s364 = smul.addr %s363, 8
          %s365 = scalar_lea.vmem %s0, %s364
          %s366 = smul.u32 2, %s22
        $region52: #{tpu_custom_call.1} parent=47 // pred_fallthru
          _
        // Predicated region
        $region53: #{tpu_custom_call.1} parent=47 // pred_check
          %p367 = pneg %p68
        $region54: #{tpu_custom_call.1} parent=47 // pred_check_branch
          %369 = sbr.rel (%p367) target = $region56
        $region55: #{tpu_custom_call.1} parent=47 // pred_region
          %s370 = smul.u32 2, %s22
          %p371 = scmp.lt.s32.totalorder %s370, 3
          %s372 = scalar_select %p371, %s370, 3
          %s373 = smul.addr %s372, 8
          %s374 = scalar_lea.vmem %s1, %s373
          %s375 = smul.u32 2, %s22
        $region56: #{tpu_custom_call.1} parent=47 // pred_fallthru
          _
      $region48: #{tpu_custom_call.1} parent=5 // pred_fallthru
        _
      %p376 = scmp.le.s32.totalorder 1, %s22
      %p377 = scmp.lt.s32.totalorder %s22, 3
      %p378 = pnand %p376, %p377
      %p379 = pneg %p378
      // Predicated region
      $region57: #{tpu_custom_call.1} parent=5 // pred_check
        _
      $region58: #{tpu_custom_call.1} parent=5 // pred_check_branch
        %381 = sbr.rel (%p378) target = $region60
      $region59: #{tpu_custom_call.1} parent=5 // pred_region
        %s382 = ssub.s32 %s22, 1
        // Predicated region
        $region61: #{tpu_custom_call.1} parent=59 // pred_check
          %p383 = pneg %p137
        $region62: #{tpu_custom_call.1} parent=59 // pred_check_branch
          %385 = sbr.rel (%p383) target = $region64
        $region63: #{tpu_custom_call.1} parent=59 // pred_region
          %386 = dma.done [#allocation4], 16
        $region64: #{tpu_custom_call.1} parent=59 // pred_fallthru
          _
        // Predicated region
        $region65: #{tpu_custom_call.1} parent=59 // pred_check
          %p387 = pneg %p158
        $region66: #{tpu_custom_call.1} parent=59 // pred_check_branch
          %389 = sbr.rel (%p387) target = $region68
        $region67: #{tpu_custom_call.1} parent=59 // pred_region
          %390 = dma.done [#allocation7], 16
        $region68: #{tpu_custom_call.1} parent=59 // pred_fallthru
          _
        // Predicated region
        $region69: #{tpu_custom_call.1} parent=59 // pred_check
          %p391 = pneg %p179
        $region70: #{tpu_custom_call.1} parent=59 // pred_check_branch
          %393 = sbr.rel (%p391) target = $region72
        $region71: #{tpu_custom_call.1} parent=59 // pred_region
          %394 = dma.done [#allocation7], 512
        $region72: #{tpu_custom_call.1} parent=59 // pred_fallthru
          _
        // Predicated region
        $region73: #{tpu_custom_call.1} parent=59 // pred_check
          %p395 = pneg %p200
        $region74: #{tpu_custom_call.1} parent=59 // pred_check_branch
          %397 = sbr.rel (%p395) target = $region76
        $region75: #{tpu_custom_call.1} parent=59 // pred_region
          %398 = dma.done [#allocation10], 512
        $region76: #{tpu_custom_call.1} parent=59 // pred_fallthru
          _
        // Predicated region
        $region77: #{tpu_custom_call.1} parent=59 // pred_check
          %p399 = pneg %p221
        $region78: #{tpu_custom_call.1} parent=59 // pred_check_branch
          %401 = sbr.rel (%p399) target = $region80
        $region79: #{tpu_custom_call.1} parent=59 // pred_region
          %402 = dma.done [#allocation10], 512
        $region80: #{tpu_custom_call.1} parent=59 // pred_fallthru
          _
        %s403 = smul.u32 2, %s27
        %p404 = scmp.lt.s32.totalorder %s403, 3
        %s405 = scalar_select %p404, %s403, 3
        %s406 = smul.addr %s405, 2
        %s407 = smul.addr %s406, 8
        %s408 = scalar_lea.vmem %s0, %s407
        %p409 = pneg %p48
        %p410 = pneg %p45
        %s411 = smul.u32 2, %s27
        %p412 = scmp.lt.s32.totalorder %s411, 3
        %s413 = scalar_select %p412, %s411, 3
        %s414 = smul.addr %s413, 8
        %s415 = scalar_lea.vmem %s1, %s414
        %p416 = pneg %p74
        %p417 = pneg %p71
        %p418 = pneg %p95
        %p419 = pneg %p92
        %p420 = pneg %p116
        %p421 = pneg %p113
        %p422 = pneg %p137
        %p423 = pneg %p134
        %p424 = pneg %p158
        %p425 = pneg %p155
        %p426 = pneg %p179
        %p427 = pneg %p176
        %p428 = pneg %p200
        %p429 = pneg %p197
        %p430 = pneg %p221
        %p431 = pneg %p218
        %p432 = pneg %p242
        %p433 = pneg %p239
        %p434 = pneg %p268
        %p435 = pneg %p265
        %s436 = sand.u32 %s255, 1
        %s437 = scalar_lea.sflag [#allocation5], %s436
        %s438 = sand.u32 %s255, 1
        %s439 = smul.addr %s438, 16
        %s440 = scalar_lea.vmem [#allocation12], %s439
        %s441 = smul.u32 2, %s27
        %p442 = scmp.lt.s32.totalorder %s441, 3
        %s443 = scalar_select %p442, %s441, 3
        %s444 = smul.addr %s443, 2
        %s445 = smul.addr %s444, 8
        %s446 = scalar_lea.vmem %s0, %s445
        %s447 = smul.u32 2, %s27
        %s448 = smul.u32 2, %s27
        %p449 = scmp.lt.s32.totalorder %s448, 3
        %s450 = scalar_select %p449, %s448, 3
        %s451 = smul.addr %s450, 8
        %s452 = scalar_lea.vmem %s1, %s451
        %s453 = smul.u32 2, %s27
        %s454 = smul.u32 2, %s27
        %v455 = vld [vmem:[%s446] sm:$0xff]
        %v456 = vld [vmem:[%s446 + $0x8] sm:$0xff]
        %v457 = vld [vmem:[%s446 + $0x10] sm:$0xff]
        %v458 = vld [vmem:[%s446 + $0x18] sm:$0xff]
        %v459 = vld [vmem:[%s452] sm:$0xff]
        %v460 = vld [vmem:[%s452 + $0x8] sm:$0xff]
        %v461 = vld [vmem:[%s2] sm:$0x1]
        %v462 = vld [vmem:[%s3] sm:$0x1]
        %vm463 = vcmask 261120
        %v464 = vsel %vm463, %v455, 0.0
        %465 = vadd.xlane.f32.xlu0 %v464
        %v466 = vpop.xlane.xlu0 %465
        %v467 = vsel %vm463, %v456, 0.0
        %468 = vadd.xlane.f32.xlu0 %v467
        %v469 = vpop.xlane.xlu0 %468
        %v470 = vsel %vm463, %v457, 0.0
        %471 = vadd.xlane.f32.xlu0 %v470
        %v472 = vpop.xlane.xlu0 %471
        %v473 = vsel %vm463, %v458, 0.0
        %474 = vadd.xlane.f32.xlu0 %v473
        %v475 = vpop.xlane.xlu0 %474
        %v476 = vrcp.pop 32.0
        %v477 = vmul.f32 %v466, %v476
        %v478 = vmul.f32 %v469, %v476
        %v479 = vmul.f32 %v472, %v476
        %v480 = vmul.f32 %v475, %v476
        %v481 = vsub.f32 %v455, %v477
        %v482 = vsub.f32 %v456, %v478
        %v483 = vsub.f32 %v457, %v479
        %v484 = vsub.f32 %v458, %v480
        %v485 = vmul.f32 %v481, %v481
        %v486 = vmul.f32 %v482, %v482
        %v487 = vmul.f32 %v483, %v483
        %v488 = vmul.f32 %v484, %v484
        %v489 = vsel %vm463, %v485, 0.0
        %490 = vadd.xlane.f32.xlu0 %v489
        %v491 = vpop.xlane.xlu0 %490
        %v492 = vsel %vm463, %v486, 0.0
        %493 = vadd.xlane.f32.xlu0 %v492
        %v494 = vpop.xlane.xlu0 %493
        %v495 = vsel %vm463, %v487, 0.0
        %496 = vadd.xlane.f32.xlu0 %v495
        %v497 = vpop.xlane.xlu0 %496
        %v498 = vsel %vm463, %v488, 0.0
        %499 = vadd.xlane.f32.xlu0 %v498
        %v500 = vpop.xlane.xlu0 %499
        %v501 = vmul.f32 %v491, %v476
        %v502 = vmul.f32 %v494, %v476
        %v503 = vmul.f32 %v497, %v476
        %v504 = vmul.f32 %v500, %v476
        %v505 = vadd.f32 %v501, 1e-05
        %v506 = vadd.f32 %v502, 1e-05
        %v507 = vadd.f32 %v503, 1e-05
        %v508 = vadd.f32 %v504, 1e-05
        %v509 = vrsqrt.pop %v505
        %v510 = vrsqrt.pop %v506
        %v511 = vrsqrt.pop %v507
        %v512 = vrsqrt.pop %v508
        %v513 = vmul.f32 %v481, %v509
        %v514 = vmul.f32 %v482, %v510
        %v515 = vmul.f32 %v483, %v511
        %v516 = vmul.f32 %v484, %v512
        %v518 = vlaneseq
        %v519 = vshrl.u32 %v518, 7
        %v520 = vsub.s32 0, %v519
        %v521 = vrot.slane %v461, %v520
        %v523 = vmul.f32 %v513, %v521
        %v524 = vmul.f32 %v514, %v521
        %v525 = vmul.f32 %v515, %v521
        %v526 = vmul.f32 %v516, %v521
        %v528 = vlaneseq
        %v529 = vshrl.u32 %v528, 7
        %v530 = vsub.s32 0, %v529
        %v531 = vrot.slane %v462, %v530
        %v533 = vadd.f32 %v523, %v531
        %v534 = vadd.f32 %v524, %v531
        %v535 = vadd.f32 %v525, %v531
        %v536 = vadd.f32 %v526, %v531
        %v537 = vld [vmem:[#allocation3] sm:$0x1]
        %v538 = vld [vmem:[#allocation6] sm:$0x1]
        %v539 = vsel %vm463, %v459, 0.0
        %540 = vadd.xlane.f32.xlu0 %v539
        %v541 = vpop.xlane.xlu0 %540
        %v542 = vsel %vm463, %v460, 0.0
        %543 = vadd.xlane.f32.xlu0 %v542
        %v544 = vpop.xlane.xlu0 %543
        %v545 = vmul.f32 %v541, %v476
        %v546 = vmul.f32 %v544, %v476
        %v547 = vsub.f32 %v459, %v545
        %v548 = vsub.f32 %v460, %v546
        %v549 = vmul.f32 %v547, %v547
        %v550 = vmul.f32 %v548, %v548
        %v551 = vsel %vm463, %v549, 0.0
        %552 = vadd.xlane.f32.xlu0 %v551
        %v553 = vpop.xlane.xlu0 %552
        %v554 = vsel %vm463, %v550, 0.0
        %555 = vadd.xlane.f32.xlu0 %v554
        %v556 = vpop.xlane.xlu0 %555
        %v557 = vmul.f32 %v553, %v476
        %v558 = vmul.f32 %v556, %v476
        %v559 = vadd.f32 %v557, 1e-05
        %v560 = vadd.f32 %v558, 1e-05
        %v561 = vrsqrt.pop %v559
        %v562 = vrsqrt.pop %v560
        %v563 = vmul.f32 %v547, %v561
        %v564 = vmul.f32 %v548, %v562
        %v566 = vlaneseq
        %v567 = vshrl.u32 %v566, 7
        %v568 = vsub.s32 0, %v567
        %v569 = vrot.slane %v537, %v568
        %v571 = vmul.f32 %v563, %v569
        %v572 = vmul.f32 %v564, %v569
        %v574 = vlaneseq
        %v575 = vshrl.u32 %v574, 7
        %v576 = vsub.s32 0, %v575
        %v577 = vrot.slane %v538, %v576
        %v579 = vadd.f32 %v571, %v577
        %v580 = vadd.f32 %v572, %v577
        %v581 = vld [vmem:[#allocation8] sm:$0xff]
        %v582 = vld [vmem:[#allocation8 + $0x8] sm:$0xff]
        %v583 = vld [vmem:[#allocation8 + $0x10] sm:$0xff]
        %v584 = vld [vmem:[#allocation8 + $0x18] sm:$0xff]
        %v586 = vsel %vm463, %v579, 0
        %v589 = vsel %vm463, %v580, 0
        %591 = vmatprep.subr.mxu0 0.0
        %592 = vmatpush1.msra.mxu0 %v581
        %593 = vmatprep.subr.mxu0 0.0
        %594 = vmatpush1.msra.mxu0 %v582
        %595 = vmatprep.subr.mxu0 0.0
        %596 = vmatpush1.msra.mxu0 %v583
        %597 = vmatprep.subr.mxu0 0.0
        %598 = vmatpush1.msra.mxu0 %v584
        %599 = vmatprep.subr.mxu0 0.0
        %600 = vmatpush1.msra.mxu0 0.0
        %601 = vmatprep.subr.mxu0 0.0
        %602 = vmatpush1.msra.mxu0 0.0
        %603 = vmatprep.subr.mxu0 0.0
        %604 = vmatpush1.msra.mxu0 0.0
        %605 = vmatprep.subr.mxu0 0.0
        %606 = vmatpush1.msra.mxu0 0.0
        %607 = vmatprep.subr.mxu0 0.0
        %608 = vmatpush1.msra.mxu0 0.0
        %609 = vmatprep.subr.mxu0 0.0
        %610 = vmatpush1.msra.mxu0 0.0
        %611 = vmatprep.subr.mxu0 0.0
        %612 = vmatpush1.msra.mxu0 0.0
        %613 = vmatprep.subr.mxu0 0.0
        %614 = vmatpush1.msra.mxu0 0.0
        %615 = vmatprep.subr.mxu0 0.0
        %616 = vmatpush1.msra.mxu0 0.0
        %617 = vmatprep.subr.mxu0 0.0
        %618 = vmatpush1.msra.mxu0 0.0
        %619 = vmatprep.subr.mxu0 0.0
        %620 = vmatpush1.msra.mxu0 0.0
        %621 = vmatprep.subr.mxu0 0.0
        %622 = vmatpush1.msra.mxu0 0.0
        %623 = vmatprep.subr.mxu0 0.0
        %624 = vmatpush1.msra.mxu0 0.0
        %625 = vmatprep.subr.mxu0 0.0
        %626 = vmatpush1.msra.mxu0 0.0
        %627 = vmatprep.subr.mxu0 0.0
        %628 = vmatpush1.msra.mxu0 0.0
        %629 = vmatprep.subr.mxu0 0.0
        %630 = vmatpush1.msra.mxu0 0.0
        %631 = vmatprep.subr.mxu0 0.0
        %632 = vmatpush1.msra.mxu0 0.0
        %633 = vmatprep.subr.mxu0 0.0
        %634 = vmatpush1.msra.mxu0 0.0
        %635 = vmatprep.subr.mxu0 0.0
        %636 = vmatpush1.msra.mxu0 0.0
        %637 = vmatprep.subr.mxu0 0.0
        %638 = vmatpush1.msra.mxu0 0.0
        %639 = vmatprep.subr.mxu0 0.0
        %640 = vmatpush1.msra.mxu0 0.0
        %641 = vmatprep.subr.mxu0 0.0
        %642 = vmatpush1.msra.mxu0 0.0
        %643 = vmatprep.subr.mxu0 0.0
        %644 = vmatpush1.msra.mxu0 0.0
        %645 = vmatprep.subr.mxu0 0.0
        %646 = vmatpush1.msra.mxu0 0.0
        %647 = vmatprep.subr.mxu0 0.0
        %648 = vmatpush1.msra.mxu0 0.0
        %649 = vmatprep.subr.mxu0 0.0
        %650 = vmatpush1.msra.mxu0 0.0
        %651 = vmatprep.subr.mxu0 0.0
        %652 = vmatpush1.msra.mxu0 0.0
        %653 = vmatprep.subr.mxu0 0.0
        %654 = vmatpush1.msra.mxu0 0.0
        %655 = vmatprep.mubr.f32.mxu0 0.0
        %656 = vmatmul.mubr.f32.gmra.mrb[0].mxu0 %v586
        %v657 = vpop.f32.mrb[0].mxu0
        %v658 = vadd.f32 0.0, %v657
        %v659 = vpop.f32.mrb[0].mxu0
        %660 = vmatprep.mubr.f32.mxu0 0.0
        %661 = vmatmul.mubr.f32.gmra.mrb[0].mxu0 %v589
        %v662 = vpop.f32.mrb[0].mxu0
        %v663 = vadd.f32 0.0, %v662
        %v664 = vpop.f32.mrb[0].mxu0
        %665 = vdwg.mxu0
        %v666 = vld [vmem:[#allocation9] sm:$0xff]
        %v667 = vld [vmem:[#allocation9 + $0x8] sm:$0xff]
        %v668 = vld [vmem:[#allocation9 + $0x10] sm:$0xff]
        %v669 = vld [vmem:[#allocation9 + $0x18] sm:$0xff]
        %v671 = vsel %vm463, %v533, 0
        %v674 = vsel %vm463, %v534, 0
        %v677 = vsel %vm463, %v535, 0
        %v680 = vsel %vm463, %v536, 0
        %682 = vmatprep.subr.mxu0 0.0
        %683 = vmatpush1.msra.mxu0 %v666
        %684 = vmatprep.subr.mxu0 0.0
        %685 = vmatpush1.msra.mxu0 %v667
        %686 = vmatprep.subr.mxu0 0.0
        %687 = vmatpush1.msra.mxu0 %v668
        %688 = vmatprep.subr.mxu0 0.0
        %689 = vmatpush1.msra.mxu0 %v669
        %690 = vmatprep.subr.mxu0 0.0
        %691 = vmatpush1.msra.mxu0 0.0
        %692 = vmatprep.subr.mxu0 0.0
        %693 = vmatpush1.msra.mxu0 0.0
        %694 = vmatprep.subr.mxu0 0.0
        %695 = vmatpush1.msra.mxu0 0.0
        %696 = vmatprep.subr.mxu0 0.0
        %697 = vmatpush1.msra.mxu0 0.0
        %698 = vmatprep.subr.mxu0 0.0
        %699 = vmatpush1.msra.mxu0 0.0
        %700 = vmatprep.subr.mxu0 0.0
        %701 = vmatpush1.msra.mxu0 0.0
        %702 = vmatprep.subr.mxu0 0.0
        %703 = vmatpush1.msra.mxu0 0.0
        %704 = vmatprep.subr.mxu0 0.0
        %705 = vmatpush1.msra.mxu0 0.0
        %706 = vmatprep.subr.mxu0 0.0
        %707 = vmatpush1.msra.mxu0 0.0
        %708 = vmatprep.subr.mxu0 0.0
        %709 = vmatpush1.msra.mxu0 0.0
        %710 = vmatprep.subr.mxu0 0.0
        %711 = vmatpush1.msra.mxu0 0.0
        %712 = vmatprep.subr.mxu0 0.0
        %713 = vmatpush1.msra.mxu0 0.0
        %714 = vmatprep.subr.mxu0 0.0
        %715 = vmatpush1.msra.mxu0 0.0
        %716 = vmatprep.subr.mxu0 0.0
        %717 = vmatpush1.msra.mxu0 0.0
        %718 = vmatprep.subr.mxu0 0.0
        %719 = vmatpush1.msra.mxu0 0.0
        %720 = vmatprep.subr.mxu0 0.0
        %721 = vmatpush1.msra.mxu0 0.0
        %722 = vmatprep.subr.mxu0 0.0
        %723 = vmatpush1.msra.mxu0 0.0
        %724 = vmatprep.subr.mxu0 0.0
        %725 = vmatpush1.msra.mxu0 0.0
        %726 = vmatprep.subr.mxu0 0.0
        %727 = vmatpush1.msra.mxu0 0.0
        %728 = vmatprep.subr.mxu0 0.0
        %729 = vmatpush1.msra.mxu0 0.0
        %730 = vmatprep.subr.mxu0 0.0
        %731 = vmatpush1.msra.mxu0 0.0
        %732 = vmatprep.subr.mxu0 0.0
        %733 = vmatpush1.msra.mxu0 0.0
        %734 = vmatprep.subr.mxu0 0.0
        %735 = vmatpush1.msra.mxu0 0.0
        %736 = vmatprep.subr.mxu0 0.0
        %737 = vmatpush1.msra.mxu0 0.0
        %738 = vmatprep.subr.mxu0 0.0
        %739 = vmatpush1.msra.mxu0 0.0
        %740 = vmatprep.subr.mxu0 0.0
        %741 = vmatpush1.msra.mxu0 0.0
        %742 = vmatprep.subr.mxu0 0.0
        %743 = vmatpush1.msra.mxu0 0.0
        %744 = vmatprep.subr.mxu0 0.0
        %745 = vmatpush1.msra.mxu0 0.0
        %746 = vmatprep.mubr.f32.mxu0 0.0
        %747 = vmatmul.mubr.f32.gmra.mrb[0].mxu0 %v671
        %v748 = vpop.f32.mrb[0].mxu0
        %v749 = vadd.f32 0.0, %v748
        %v750 = vpop.f32.mrb[0].mxu0
        %751 = vmatprep.mubr.f32.mxu0 0.0
        %752 = vmatmul.mubr.f32.gmra.mrb[0].mxu0 %v674
        %v753 = vpop.f32.mrb[0].mxu0
        %v754 = vadd.f32 0.0, %v753
        %v755 = vpop.f32.mrb[0].mxu0
        %756 = vmatprep.mubr.f32.mxu0 0.0
        %757 = vmatmul.mubr.f32.gmra.mrb[0].mxu0 %v677
        %v758 = vpop.f32.mrb[0].mxu0
        %v759 = vadd.f32 0.0, %v758
        %v760 = vpop.f32.mrb[0].mxu0
        %761 = vmatprep.mubr.f32.mxu0 0.0
        %762 = vmatmul.mubr.f32.gmra.mrb[0].mxu0 %v680
        %v763 = vpop.f32.mrb[0].mxu0
        %v764 = vadd.f32 0.0, %v763
        %v765 = vpop.f32.mrb[0].mxu0
        %766 = vdwg.mxu0
        %v767 = vld [vmem:[#allocation11] sm:$0xff]
        %v768 = vld [vmem:[#allocation11 + $0x8] sm:$0xff]
        %v769 = vld [vmem:[#allocation11 + $0x10] sm:$0xff]
        %v770 = vld [vmem:[#allocation11 + $0x18] sm:$0xff]
        %771 = vmatprep.subr.mxu0 0.0
        %772 = vmatpush1.msra.mxu0 %v767
        %773 = vmatprep.subr.mxu0 0.0
        %774 = vmatpush1.msra.mxu0 %v768
        %775 = vmatprep.subr.mxu0 0.0
        %776 = vmatpush1.msra.mxu0 %v769
        %777 = vmatprep.subr.mxu0 0.0
        %778 = vmatpush1.msra.mxu0 %v770
        %779 = vmatprep.subr.mxu0 0.0
        %780 = vmatpush1.msra.mxu0 0.0
        %781 = vmatprep.subr.mxu0 0.0
        %782 = vmatpush1.msra.mxu0 0.0
        %783 = vmatprep.subr.mxu0 0.0
        %784 = vmatpush1.msra.mxu0 0.0
        %785 = vmatprep.subr.mxu0 0.0
        %786 = vmatpush1.msra.mxu0 0.0
        %787 = vmatprep.subr.mxu0 0.0
        %788 = vmatpush1.msra.mxu0 0.0
        %789 = vmatprep.subr.mxu0 0.0
        %790 = vmatpush1.msra.mxu0 0.0
        %791 = vmatprep.subr.mxu0 0.0
        %792 = vmatpush1.msra.mxu0 0.0
        %793 = vmatprep.subr.mxu0 0.0
        %794 = vmatpush1.msra.mxu0 0.0
        %795 = vmatprep.subr.mxu0 0.0
        %796 = vmatpush1.msra.mxu0 0.0
        %797 = vmatprep.subr.mxu0 0.0
        %798 = vmatpush1.msra.mxu0 0.0
        %799 = vmatprep.subr.mxu0 0.0
        %800 = vmatpush1.msra.mxu0 0.0
        %801 = vmatprep.subr.mxu0 0.0
        %802 = vmatpush1.msra.mxu0 0.0
        %803 = vmatprep.subr.mxu0 0.0
        %804 = vmatpush1.msra.mxu0 0.0
        %805 = vmatprep.subr.mxu0 0.0
        %806 = vmatpush1.msra.mxu0 0.0
        %807 = vmatprep.subr.mxu0 0.0
        %808 = vmatpush1.msra.mxu0 0.0
        %809 = vmatprep.subr.mxu0 0.0
        %810 = vmatpush1.msra.mxu0 0.0
        %811 = vmatprep.subr.mxu0 0.0
        %812 = vmatpush1.msra.mxu0 0.0
        %813 = vmatprep.subr.mxu0 0.0
        %814 = vmatpush1.msra.mxu0 0.0
        %815 = vmatprep.subr.mxu0 0.0
        %816 = vmatpush1.msra.mxu0 0.0
        %817 = vmatprep.subr.mxu0 0.0
        %818 = vmatpush1.msra.mxu0 0.0
        %819 = vmatprep.subr.mxu0 0.0
        %820 = vmatpush1.msra.mxu0 0.0
        %821 = vmatprep.subr.mxu0 0.0
        %822 = vmatpush1.msra.mxu0 0.0
        %823 = vmatprep.subr.mxu0 0.0
        %824 = vmatpush1.msra.mxu0 0.0
        %825 = vmatprep.subr.mxu0 0.0
        %826 = vmatpush1.msra.mxu0 0.0
        %827 = vmatprep.subr.mxu0 0.0
        %828 = vmatpush1.msra.mxu0 0.0
        %829 = vmatprep.subr.mxu0 0.0
        %830 = vmatpush1.msra.mxu0 0.0
        %831 = vmatprep.subr.mxu0 0.0
        %832 = vmatpush1.msra.mxu0 0.0
        %833 = vmatprep.subr.mxu0 0.0
        %834 = vmatpush1.msra.mxu0 0.0
        %835 = vmatprep.mubr.f32.mxu0 0.0
        %836 = vmatmul.mubr.f32.gmra.mrb[0].mxu0 %v671
        %v837 = vpop.f32.mrb[0].mxu0
        %v838 = vadd.f32 0.0, %v837
        %v839 = vpop.f32.mrb[0].mxu0
        %840 = vmatprep.mubr.f32.mxu0 0.0
        %841 = vmatmul.mubr.f32.gmra.mrb[0].mxu0 %v674
        %v842 = vpop.f32.mrb[0].mxu0
        %v843 = vadd.f32 0.0, %v842
        %v844 = vpop.f32.mrb[0].mxu0
        %845 = vmatprep.mubr.f32.mxu0 0.0
        %846 = vmatmul.mubr.f32.gmra.mrb[0].mxu0 %v677
        %v847 = vpop.f32.mrb[0].mxu0
        %v848 = vadd.f32 0.0, %v847
        %v849 = vpop.f32.mrb[0].mxu0
        %850 = vmatprep.mubr.f32.mxu0 0.0
        %851 = vmatmul.mubr.f32.gmra.mrb[0].mxu0 %v680
        %v852 = vpop.f32.mrb[0].mxu0
        %v853 = vadd.f32 0.0, %v852
        %v854 = vpop.f32.mrb[0].mxu0
        %855 = vdwg.mxu0
        %vm856 = vcmask 130048
        %v858 = vsel %vm856, %v658, 0
        %v861 = vsel %vm856, %v749, 0
        %v864 = vsel %vm856, %v754, 0
        %866 = vmatprep.subr.mxu0 0.0
        %867 = vmatpush1.xpose.msra.mxu0 %v861
        %868 = vmatprep.subr.mxu0 0.0
        %869 = vmatpush1.xpose.msra.mxu0 %v864
        %870 = vmatprep.subr.mxu0 0.0
        %871 = vmatpush1.xpose.msra.mxu0 0.0
        %872 = vmatprep.subr.mxu0 0.0
        %873 = vmatpush1.xpose.msra.mxu0 0.0
        %874 = vmatprep.subr.mxu0 0.0
        %875 = vmatpush1.xpose.msra.mxu0 0.0
        %876 = vmatprep.subr.mxu0 0.0
        %877 = vmatpush1.xpose.msra.mxu0 0.0
        %878 = vmatprep.subr.mxu0 0.0
        %879 = vmatpush1.xpose.msra.mxu0 0.0
        %880 = vmatprep.subr.mxu0 0.0
        %881 = vmatpush1.xpose.msra.mxu0 0.0
        %882 = vmatprep.subr.mxu0 0.0
        %883 = vmatpush1.xpose.msra.mxu0 0.0
        %884 = vmatprep.subr.mxu0 0.0
        %885 = vmatpush1.xpose.msra.mxu0 0.0
        %886 = vmatprep.subr.mxu0 0.0
        %887 = vmatpush1.xpose.msra.mxu0 0.0
        %888 = vmatprep.subr.mxu0 0.0
        %889 = vmatpush1.xpose.msra.mxu0 0.0
        %890 = vmatprep.subr.mxu0 0.0
        %891 = vmatpush1.xpose.msra.mxu0 0.0
        %892 = vmatprep.subr.mxu0 0.0
        %893 = vmatpush1.xpose.msra.mxu0 0.0
        %894 = vmatprep.subr.mxu0 0.0
        %895 = vmatpush1.xpose.msra.mxu0 0.0
        %896 = vmatprep.subr.mxu0 0.0
        %897 = vmatpush1.xpose.msra.mxu0 0.0
        %898 = vmatprep.subr.mxu0 0.0
        %899 = vmatpush1.xpose.msra.mxu0 0.0
        %900 = vmatprep.subr.mxu0 0.0
        %901 = vmatpush1.xpose.msra.mxu0 0.0
        %902 = vmatprep.subr.mxu0 0.0
        %903 = vmatpush1.xpose.msra.mxu0 0.0
        %904 = vmatprep.subr.mxu0 0.0
        %905 = vmatpush1.xpose.msra.mxu0 0.0
        %906 = vmatprep.subr.mxu0 0.0
        %907 = vmatpush1.xpose.msra.mxu0 0.0
        %908 = vmatprep.subr.mxu0 0.0
        %909 = vmatpush1.xpose.msra.mxu0 0.0
        %910 = vmatprep.subr.mxu0 0.0
        %911 = vmatpush1.xpose.msra.mxu0 0.0
        %912 = vmatprep.subr.mxu0 0.0
        %913 = vmatpush1.xpose.msra.mxu0 0.0
        %914 = vmatprep.subr.mxu0 0.0
        %915 = vmatpush1.xpose.msra.mxu0 0.0
        %916 = vmatprep.subr.mxu0 0.0
        %917 = vmatpush1.xpose.msra.mxu0 0.0
        %918 = vmatprep.subr.mxu0 0.0
        %919 = vmatpush1.xpose.msra.mxu0 0.0
        %920 = vmatprep.subr.mxu0 0.0
        %921 = vmatpush1.xpose.msra.mxu0 0.0
        %922 = vmatprep.subr.mxu0 0.0
        %923 = vmatpush1.xpose.msra.mxu0 0.0
        %924 = vmatprep.subr.mxu0 0.0
        %925 = vmatpush1.xpose.msra.mxu0 0.0
        %926 = vmatprep.subr.mxu0 0.0
        %927 = vmatpush1.xpose.msra.mxu0 0.0
        %928 = vmatprep.subr.mxu0 0.0
        %929 = vmatpush1.xpose.msra.mxu0 0.0
        %930 = vmatprep.mubr.f32.mxu0 0.0
        %931 = vmatmul.mubr.f32.gmra.mrb[0].mxu0 %v858
        %v932 = vpop.f32.mrb[0].mxu0
        %v933 = vadd.f32 0.0, %v932
        %v934 = vpop.f32.mrb[0].mxu0
        %935 = vdwg.mxu0
        %v937 = vsel %vm856, %v663, 0
        %v940 = vsel %vm856, %v759, 0
        %v943 = vsel %vm856, %v764, 0
        %945 = vmatprep.subr.mxu0 0.0
        %946 = vmatpush1.xpose.msra.mxu0 %v940
        %947 = vmatprep.subr.mxu0 0.0
        %948 = vmatpush1.xpose.msra.mxu0 %v943
        %949 = vmatprep.subr.mxu0 0.0
        %950 = vmatpush1.xpose.msra.mxu0 0.0
        %951 = vmatprep.subr.mxu0 0.0
        %952 = vmatpush1.xpose.msra.mxu0 0.0
        %953 = vmatprep.subr.mxu0 0.0
        %954 = vmatpush1.xpose.msra.mxu0 0.0
        %955 = vmatprep.subr.mxu0 0.0
        %956 = vmatpush1.xpose.msra.mxu0 0.0
        %957 = vmatprep.subr.mxu0 0.0
        %958 = vmatpush1.xpose.msra.mxu0 0.0
        %959 = vmatprep.subr.mxu0 0.0
        %960 = vmatpush1.xpose.msra.mxu0 0.0
        %961 = vmatprep.subr.mxu0 0.0
        %962 = vmatpush1.xpose.msra.mxu0 0.0
        %963 = vmatprep.subr.mxu0 0.0
        %964 = vmatpush1.xpose.msra.mxu0 0.0
        %965 = vmatprep.subr.mxu0 0.0
        %966 = vmatpush1.xpose.msra.mxu0 0.0
        %967 = vmatprep.subr.mxu0 0.0
        %968 = vmatpush1.xpose.msra.mxu0 0.0
        %969 = vmatprep.subr.mxu0 0.0
        %970 = vmatpush1.xpose.msra.mxu0 0.0
        %971 = vmatprep.subr.mxu0 0.0
        %972 = vmatpush1.xpose.msra.mxu0 0.0
        %973 = vmatprep.subr.mxu0 0.0
        %974 = vmatpush1.xpose.msra.mxu0 0.0
        %975 = vmatprep.subr.mxu0 0.0
        %976 = vmatpush1.xpose.msra.mxu0 0.0
        %977 = vmatprep.subr.mxu0 0.0
        %978 = vmatpush1.xpose.msra.mxu0 0.0
        %979 = vmatprep.subr.mxu0 0.0
        %980 = vmatpush1.xpose.msra.mxu0 0.0
        %981 = vmatprep.subr.mxu0 0.0
        %982 = vmatpush1.xpose.msra.mxu0 0.0
        %983 = vmatprep.subr.mxu0 0.0
        %984 = vmatpush1.xpose.msra.mxu0 0.0
        %985 = vmatprep.subr.mxu0 0.0
        %986 = vmatpush1.xpose.msra.mxu0 0.0
        %987 = vmatprep.subr.mxu0 0.0
        %988 = vmatpush1.xpose.msra.mxu0 0.0
        %989 = vmatprep.subr.mxu0 0.0
        %990 = vmatpush1.xpose.msra.mxu0 0.0
        %991 = vmatprep.subr.mxu0 0.0
        %992 = vmatpush1.xpose.msra.mxu0 0.0
        %993 = vmatprep.subr.mxu0 0.0
        %994 = vmatpush1.xpose.msra.mxu0 0.0
        %995 = vmatprep.subr.mxu0 0.0
        %996 = vmatpush1.xpose.msra.mxu0 0.0
        %997 = vmatprep.subr.mxu0 0.0
        %998 = vmatpush1.xpose.msra.mxu0 0.0
        %999 = vmatprep.subr.mxu0 0.0
        %1000 = vmatpush1.xpose.msra.mxu0 0.0
        %1001 = vmatprep.subr.mxu0 0.0
        %1002 = vmatpush1.xpose.msra.mxu0 0.0
        %1003 = vmatprep.subr.mxu0 0.0
        %1004 = vmatpush1.xpose.msra.mxu0 0.0
        %1005 = vmatprep.subr.mxu0 0.0
        %1006 = vmatpush1.xpose.msra.mxu0 0.0
        %1007 = vmatprep.subr.mxu0 0.0
        %1008 = vmatpush1.xpose.msra.mxu0 0.0
        %1009 = vmatprep.mubr.f32.mxu0 0.0
        %1010 = vmatmul.mubr.f32.gmra.mrb[0].mxu0 %v937
        %v1011 = vpop.f32.mrb[0].mxu0
        %v1012 = vadd.f32 0.0, %v1011
        %v1013 = vpop.f32.mrb[0].mxu0
        %1014 = vdwg.mxu0
        %v1015 = vsel %vm856, %v933, -inf
        %1016 = vmax.xlane.f32.xlu0 %v1015
        %v1017 = vpop.xlane.xlu0 %1016
        %v1018 = vsel %vm856, %v1012, -inf
        %1019 = vmax.xlane.f32.xlu0 %v1018
        %v1020 = vpop.xlane.xlu0 %1019
        %v1021 = vsub.f32 %v933, %v1017
        %v1022 = vsub.f32 %v1012, %v1020
        %v1023 = vmul.f32 %v1021, 1.442695
        %v1024 = vpow.pop %v1023
        %v1025 = vmul.f32 %v1022, 1.442695
        %v1026 = vpow.pop %v1025
        %v1027 = vsel %vm856, %v1024, 0.0
        %1028 = vadd.xlane.f32.xlu0 %v1027
        %v1029 = vpop.xlane.xlu0 %1028
        %v1030 = vsel %vm856, %v1026, 0.0
        %1031 = vadd.xlane.f32.xlu0 %v1030
        %v1032 = vpop.xlane.xlu0 %1031
        %v1033 = vrcp.pop %v1029
        %v1034 = vrcp.pop %v1032
        %v1035 = vmul.f32 %v1024, %v1033
        %v1036 = vmul.f32 %v1026, %v1034
        %v1038 = vsel %vm856, %v1035, 0
        %1040 = vmatprep.subr.mxu0 0.0
        %1041 = vmatpush1.msra.mxu0 %v838
        %1042 = vmatprep.subr.mxu0 0.0
        %1043 = vmatpush1.msra.mxu0 %v843
        %1044 = vmatprep.subr.mxu0 0.0
        %1045 = vmatpush1.msra.mxu0 0.0
        %1046 = vmatprep.subr.mxu0 0.0
        %1047 = vmatpush1.msra.mxu0 0.0
        %1048 = vmatprep.subr.mxu0 0.0
        %1049 = vmatpush1.msra.mxu0 0.0
        %1050 = vmatprep.subr.mxu0 0.0
        %1051 = vmatpush1.msra.mxu0 0.0
        %1052 = vmatprep.subr.mxu0 0.0
        %1053 = vmatpush1.msra.mxu0 0.0
        %1054 = vmatprep.subr.mxu0 0.0
        %1055 = vmatpush1.msra.mxu0 0.0
        %1056 = vmatprep.subr.mxu0 0.0
        %1057 = vmatpush1.msra.mxu0 0.0
        %1058 = vmatprep.subr.mxu0 0.0
        %1059 = vmatpush1.msra.mxu0 0.0
        %1060 = vmatprep.subr.mxu0 0.0
        %1061 = vmatpush1.msra.mxu0 0.0
        %1062 = vmatprep.subr.mxu0 0.0
        %1063 = vmatpush1.msra.mxu0 0.0
        %1064 = vmatprep.subr.mxu0 0.0
        %1065 = vmatpush1.msra.mxu0 0.0
        %1066 = vmatprep.subr.mxu0 0.0
        %1067 = vmatpush1.msra.mxu0 0.0
        %1068 = vmatprep.subr.mxu0 0.0
        %1069 = vmatpush1.msra.mxu0 0.0
        %1070 = vmatprep.subr.mxu0 0.0
        %1071 = vmatpush1.msra.mxu0 0.0
        %1072 = vmatprep.subr.mxu0 0.0
        %1073 = vmatpush1.msra.mxu0 0.0
        %1074 = vmatprep.subr.mxu0 0.0
        %1075 = vmatpush1.msra.mxu0 0.0
        %1076 = vmatprep.subr.mxu0 0.0
        %1077 = vmatpush1.msra.mxu0 0.0
        %1078 = vmatprep.subr.mxu0 0.0
        %1079 = vmatpush1.msra.mxu0 0.0
        %1080 = vmatprep.subr.mxu0 0.0
        %1081 = vmatpush1.msra.mxu0 0.0
        %1082 = vmatprep.subr.mxu0 0.0
        %1083 = vmatpush1.msra.mxu0 0.0
        %1084 = vmatprep.subr.mxu0 0.0
        %1085 = vmatpush1.msra.mxu0 0.0
        %1086 = vmatprep.subr.mxu0 0.0
        %1087 = vmatpush1.msra.mxu0 0.0
        %1088 = vmatprep.subr.mxu0 0.0
        %1089 = vmatpush1.msra.mxu0 0.0
        %1090 = vmatprep.subr.mxu0 0.0
        %1091 = vmatpush1.msra.mxu0 0.0
        %1092 = vmatprep.subr.mxu0 0.0
        %1093 = vmatpush1.msra.mxu0 0.0
        %1094 = vmatprep.subr.mxu0 0.0
        %1095 = vmatpush1.msra.mxu0 0.0
        %1096 = vmatprep.subr.mxu0 0.0
        %1097 = vmatpush1.msra.mxu0 0.0
        %1098 = vmatprep.subr.mxu0 0.0
        %1099 = vmatpush1.msra.mxu0 0.0
        %1100 = vmatprep.subr.mxu0 0.0
        %1101 = vmatpush1.msra.mxu0 0.0
        %1102 = vmatprep.subr.mxu0 0.0
        %1103 = vmatpush1.msra.mxu0 0.0
        %1104 = vmatprep.mubr.f32.mxu0 0.0
        %1105 = vmatmul.mubr.f32.gmra.mrb[0].mxu0 %v1038
        %v1106 = vpop.f32.mrb[0].mxu0
        %v1107 = vadd.f32 0.0, %v1106
        %v1108 = vpop.f32.mrb[0].mxu0
        %1109 = vdwg.mxu0
        %v1111 = vsel %vm856, %v1036, 0
        %1113 = vmatprep.subr.mxu0 0.0
        %1114 = vmatpush1.msra.mxu0 %v848
        %1115 = vmatprep.subr.mxu0 0.0
        %1116 = vmatpush1.msra.mxu0 %v853
        %1117 = vmatprep.subr.mxu0 0.0
        %1118 = vmatpush1.msra.mxu0 0.0
        %1119 = vmatprep.subr.mxu0 0.0
        %1120 = vmatpush1.msra.mxu0 0.0
        %1121 = vmatprep.subr.mxu0 0.0
        %1122 = vmatpush1.msra.mxu0 0.0
        %1123 = vmatprep.subr.mxu0 0.0
        %1124 = vmatpush1.msra.mxu0 0.0
        %1125 = vmatprep.subr.mxu0 0.0
        %1126 = vmatpush1.msra.mxu0 0.0
        %1127 = vmatprep.subr.mxu0 0.0
        %1128 = vmatpush1.msra.mxu0 0.0
        %1129 = vmatprep.subr.mxu0 0.0
        %1130 = vmatpush1.msra.mxu0 0.0
        %1131 = vmatprep.subr.mxu0 0.0
        %1132 = vmatpush1.msra.mxu0 0.0
        %1133 = vmatprep.subr.mxu0 0.0
        %1134 = vmatpush1.msra.mxu0 0.0
        %1135 = vmatprep.subr.mxu0 0.0
        %1136 = vmatpush1.msra.mxu0 0.0
        %1137 = vmatprep.subr.mxu0 0.0
        %1138 = vmatpush1.msra.mxu0 0.0
        %1139 = vmatprep.subr.mxu0 0.0
        %1140 = vmatpush1.msra.mxu0 0.0
        %1141 = vmatprep.subr.mxu0 0.0
        %1142 = vmatpush1.msra.mxu0 0.0
        %1143 = vmatprep.subr.mxu0 0.0
        %1144 = vmatpush1.msra.mxu0 0.0
        %1145 = vmatprep.subr.mxu0 0.0
        %1146 = vmatpush1.msra.mxu0 0.0
        %1147 = vmatprep.subr.mxu0 0.0
        %1148 = vmatpush1.msra.mxu0 0.0
        %1149 = vmatprep.subr.mxu0 0.0
        %1150 = vmatpush1.msra.mxu0 0.0
        %1151 = vmatprep.subr.mxu0 0.0
        %1152 = vmatpush1.msra.mxu0 0.0
        %1153 = vmatprep.subr.mxu0 0.0
        %1154 = vmatpush1.msra.mxu0 0.0
        %1155 = vmatprep.subr.mxu0 0.0
        %1156 = vmatpush1.msra.mxu0 0.0
        %1157 = vmatprep.subr.mxu0 0.0
        %1158 = vmatpush1.msra.mxu0 0.0
        %1159 = vmatprep.subr.mxu0 0.0
        %1160 = vmatpush1.msra.mxu0 0.0
        %1161 = vmatprep.subr.mxu0 0.0
        %1162 = vmatpush1.msra.mxu0 0.0
        %1163 = vmatprep.subr.mxu0 0.0
        %1164 = vmatpush1.msra.mxu0 0.0
        %1165 = vmatprep.subr.mxu0 0.0
        %1166 = vmatpush1.msra.mxu0 0.0
        %1167 = vmatprep.subr.mxu0 0.0
        %1168 = vmatpush1.msra.mxu0 0.0
        %1169 = vmatprep.subr.mxu0 0.0
        %1170 = vmatpush1.msra.mxu0 0.0
        %1171 = vmatprep.subr.mxu0 0.0
        %1172 = vmatpush1.msra.mxu0 0.0
        %1173 = vmatprep.subr.mxu0 0.0
        %1174 = vmatpush1.msra.mxu0 0.0
        %1175 = vmatprep.subr.mxu0 0.0
        %1176 = vmatpush1.msra.mxu0 0.0
        %1177 = vmatprep.mubr.f32.mxu0 0.0
        %1178 = vmatmul.mubr.f32.gmra.mrb[0].mxu0 %v1111
        %v1179 = vpop.f32.mrb[0].mxu0
        %v1180 = vadd.f32 0.0, %v1179
        %v1181 = vpop.f32.mrb[0].mxu0
        %1182 = vdwg.mxu0
        %1183 = vst.msk [vmem:[#allocation2] sm:$0xff] %vm856, %v1107
        %1184 = vst.msk [vmem:[#allocation2 + $0x8] sm:$0xff] %vm856, %v1180
        %1185 = vrot.lane.b32.xlu0 %v658, 112
        %v1186 = vpop.permute.xlu0 %1185
        %1187 = vrot.lane.b32.xlu0 %v749, 112
        %v1188 = vpop.permute.xlu0 %1187
        %1189 = vrot.lane.b32.xlu0 %v754, 112
        %v1190 = vpop.permute.xlu0 %1189
        %v1191 = vsel %vm856, %v1186, 0
        %v1193 = vsel %vm856, %v1188, 0
        %v1195 = vsel %vm856, %v1190, 0
        %1197 = vmatprep.subr.mxu0 0.0
        %1198 = vmatpush1.xpose.msra.mxu0 %v1193
        %1199 = vmatprep.subr.mxu0 0.0
        %1200 = vmatpush1.xpose.msra.mxu0 %v1195
        %1201 = vmatprep.subr.mxu0 0.0
        %1202 = vmatpush1.xpose.msra.mxu0 0.0
        %1203 = vmatprep.subr.mxu0 0.0
        %1204 = vmatpush1.xpose.msra.mxu0 0.0
        %1205 = vmatprep.subr.mxu0 0.0
        %1206 = vmatpush1.xpose.msra.mxu0 0.0
        %1207 = vmatprep.subr.mxu0 0.0
        %1208 = vmatpush1.xpose.msra.mxu0 0.0
        %1209 = vmatprep.subr.mxu0 0.0
        %1210 = vmatpush1.xpose.msra.mxu0 0.0
        %1211 = vmatprep.subr.mxu0 0.0
        %1212 = vmatpush1.xpose.msra.mxu0 0.0
        %1213 = vmatprep.subr.mxu0 0.0
        %1214 = vmatpush1.xpose.msra.mxu0 0.0
        %1215 = vmatprep.subr.mxu0 0.0
        %1216 = vmatpush1.xpose.msra.mxu0 0.0
        %1217 = vmatprep.subr.mxu0 0.0
        %1218 = vmatpush1.xpose.msra.mxu0 0.0
        %1219 = vmatprep.subr.mxu0 0.0
        %1220 = vmatpush1.xpose.msra.mxu0 0.0
        %1221 = vmatprep.subr.mxu0 0.0
        %1222 = vmatpush1.xpose.msra.mxu0 0.0
        %1223 = vmatprep.subr.mxu0 0.0
        %1224 = vmatpush1.xpose.msra.mxu0 0.0
        %1225 = vmatprep.subr.mxu0 0.0
        %1226 = vmatpush1.xpose.msra.mxu0 0.0
        %1227 = vmatprep.subr.mxu0 0.0
        %1228 = vmatpush1.xpose.msra.mxu0 0.0
        %1229 = vmatprep.subr.mxu0 0.0
        %1230 = vmatpush1.xpose.msra.mxu0 0.0
        %1231 = vmatprep.subr.mxu0 0.0
        %1232 = vmatpush1.xpose.msra.mxu0 0.0
        %1233 = vmatprep.subr.mxu0 0.0
        %1234 = vmatpush1.xpose.msra.mxu0 0.0
        %1235 = vmatprep.subr.mxu0 0.0
        %1236 = vmatpush1.xpose.msra.mxu0 0.0
        %1237 = vmatprep.subr.mxu0 0.0
        %1238 = vmatpush1.xpose.msra.mxu0 0.0
        %1239 = vmatprep.subr.mxu0 0.0
        %1240 = vmatpush1.xpose.msra.mxu0 0.0
        %1241 = vmatprep.subr.mxu0 0.0
        %1242 = vmatpush1.xpose.msra.mxu0 0.0
        %1243 = vmatprep.subr.mxu0 0.0
        %1244 = vmatpush1.xpose.msra.mxu0 0.0
        %1245 = vmatprep.subr.mxu0 0.0
        %1246 = vmatpush1.xpose.msra.mxu0 0.0
        %1247 = vmatprep.subr.mxu0 0.0
        %1248 = vmatpush1.xpose.msra.mxu0 0.0
        %1249 = vmatprep.subr.mxu0 0.0
        %1250 = vmatpush1.xpose.msra.mxu0 0.0
        %1251 = vmatprep.subr.mxu0 0.0
        %1252 = vmatpush1.xpose.msra.mxu0 0.0
        %1253 = vmatprep.subr.mxu0 0.0
        %1254 = vmatpush1.xpose.msra.mxu0 0.0
        %1255 = vmatprep.subr.mxu0 0.0
        %1256 = vmatpush1.xpose.msra.mxu0 0.0
        %1257 = vmatprep.subr.mxu0 0.0
        %1258 = vmatpush1.xpose.msra.mxu0 0.0
        %1259 = vmatprep.subr.mxu0 0.0
        %1260 = vmatpush1.xpose.msra.mxu0 0.0
        %1261 = vmatprep.mubr.f32.mxu0 0.0
        %1262 = vmatmul.mubr.f32.gmra.mrb[0].mxu0 %v1191
        %v1263 = vpop.f32.mrb[0].mxu0
        %v1264 = vadd.f32 0.0, %v1263
        %v1265 = vpop.f32.mrb[0].mxu0
        %1266 = vdwg.mxu0
        %1267 = vrot.lane.b32.xlu0 %v663, 112
        %v1268 = vpop.permute.xlu0 %1267
        %1269 = vrot.lane.b32.xlu0 %v759, 112
        %v1270 = vpop.permute.xlu0 %1269
        %1271 = vrot.lane.b32.xlu0 %v764, 112
        %v1272 = vpop.permute.xlu0 %1271
        %v1273 = vsel %vm856, %v1268, 0
        %v1275 = vsel %vm856, %v1270, 0
        %v1277 = vsel %vm856, %v1272, 0
        %1279 = vmatprep.subr.mxu0 0.0
        %1280 = vmatpush1.xpose.msra.mxu0 %v1275
        %1281 = vmatprep.subr.mxu0 0.0
        %1282 = vmatpush1.xpose.msra.mxu0 %v1277
        %1283 = vmatprep.subr.mxu0 0.0
        %1284 = vmatpush1.xpose.msra.mxu0 0.0
        %1285 = vmatprep.subr.mxu0 0.0
        %1286 = vmatpush1.xpose.msra.mxu0 0.0
        %1287 = vmatprep.subr.mxu0 0.0
        %1288 = vmatpush1.xpose.msra.mxu0 0.0
        %1289 = vmatprep.subr.mxu0 0.0
        %1290 = vmatpush1.xpose.msra.mxu0 0.0
        %1291 = vmatprep.subr.mxu0 0.0
        %1292 = vmatpush1.xpose.msra.mxu0 0.0
        %1293 = vmatprep.subr.mxu0 0.0
        %1294 = vmatpush1.xpose.msra.mxu0 0.0
        %1295 = vmatprep.subr.mxu0 0.0
        %1296 = vmatpush1.xpose.msra.mxu0 0.0
        %1297 = vmatprep.subr.mxu0 0.0
        %1298 = vmatpush1.xpose.msra.mxu0 0.0
        %1299 = vmatprep.subr.mxu0 0.0
        %1300 = vmatpush1.xpose.msra.mxu0 0.0
        %1301 = vmatprep.subr.mxu0 0.0
        %1302 = vmatpush1.xpose.msra.mxu0 0.0
        %1303 = vmatprep.subr.mxu0 0.0
        %1304 = vmatpush1.xpose.msra.mxu0 0.0
        %1305 = vmatprep.subr.mxu0 0.0
        %1306 = vmatpush1.xpose.msra.mxu0 0.0
        %1307 = vmatprep.subr.mxu0 0.0
        %1308 = vmatpush1.xpose.msra.mxu0 0.0
        %1309 = vmatprep.subr.mxu0 0.0
        %1310 = vmatpush1.xpose.msra.mxu0 0.0
        %1311 = vmatprep.subr.mxu0 0.0
        %1312 = vmatpush1.xpose.msra.mxu0 0.0
        %1313 = vmatprep.subr.mxu0 0.0
        %1314 = vmatpush1.xpose.msra.mxu0 0.0
        %1315 = vmatprep.subr.mxu0 0.0
        %1316 = vmatpush1.xpose.msra.mxu0 0.0
        %1317 = vmatprep.subr.mxu0 0.0
        %1318 = vmatpush1.xpose.msra.mxu0 0.0
        %1319 = vmatprep.subr.mxu0 0.0
        %1320 = vmatpush1.xpose.msra.mxu0 0.0
        %1321 = vmatprep.subr.mxu0 0.0
        %1322 = vmatpush1.xpose.msra.mxu0 0.0
        %1323 = vmatprep.subr.mxu0 0.0
        %1324 = vmatpush1.xpose.msra.mxu0 0.0
        %1325 = vmatprep.subr.mxu0 0.0
        %1326 = vmatpush1.xpose.msra.mxu0 0.0
        %1327 = vmatprep.subr.mxu0 0.0
        %1328 = vmatpush1.xpose.msra.mxu0 0.0
        %1329 = vmatprep.subr.mxu0 0.0
        %1330 = vmatpush1.xpose.msra.mxu0 0.0
        %1331 = vmatprep.subr.mxu0 0.0
        %1332 = vmatpush1.xpose.msra.mxu0 0.0
        %1333 = vmatprep.subr.mxu0 0.0
        %1334 = vmatpush1.xpose.msra.mxu0 0.0
        %1335 = vmatprep.subr.mxu0 0.0
        %1336 = vmatpush1.xpose.msra.mxu0 0.0
        %1337 = vmatprep.subr.mxu0 0.0
        %1338 = vmatpush1.xpose.msra.mxu0 0.0
        %1339 = vmatprep.subr.mxu0 0.0
        %1340 = vmatpush1.xpose.msra.mxu0 0.0
        %1341 = vmatprep.subr.mxu0 0.0
        %1342 = vmatpush1.xpose.msra.mxu0 0.0
        %1343 = vmatprep.mubr.f32.mxu0 0.0
        %1344 = vmatmul.mubr.f32.gmra.mrb[0].mxu0 %v1273
        %v1345 = vpop.f32.mrb[0].mxu0
        %v1346 = vadd.f32 0.0, %v1345
        %v1347 = vpop.f32.mrb[0].mxu0
        %1348 = vdwg.mxu0
        %v1349 = vsel %vm856, %v1264, -inf
        %1350 = vmax.xlane.f32.xlu0 %v1349
        %v1351 = vpop.xlane.xlu0 %1350
        %v1352 = vsel %vm856, %v1346, -inf
        %1353 = vmax.xlane.f32.xlu0 %v1352
        %v1354 = vpop.xlane.xlu0 %1353
        %v1355 = vsub.f32 %v1264, %v1351
        %v1356 = vsub.f32 %v1346, %v1354
        %v1357 = vmul.f32 %v1355, 1.442695
        %v1358 = vpow.pop %v1357
        %v1359 = vmul.f32 %v1356, 1.442695
        %v1360 = vpow.pop %v1359
        %v1361 = vsel %vm856, %v1358, 0.0
        %1362 = vadd.xlane.f32.xlu0 %v1361
        %v1363 = vpop.xlane.xlu0 %1362
        %v1364 = vsel %vm856, %v1360, 0.0
        %1365 = vadd.xlane.f32.xlu0 %v1364
        %v1366 = vpop.xlane.xlu0 %1365
        %v1367 = vrcp.pop %v1363
        %v1368 = vrcp.pop %v1366
        %v1369 = vmul.f32 %v1358, %v1367
        %v1370 = vmul.f32 %v1360, %v1368
        %1373 = vrot.lane.b32.xlu0 %v838, 112
        %v1374 = vpop.permute.xlu0 %1373
        %1375 = vrot.lane.b32.xlu0 %v843, 112
        %v1376 = vpop.permute.xlu0 %1375
        %v1380 = vsel %vm856, %v1369, 0
        %1382 = vmatprep.subr.mxu0 0.0
        %1383 = vmatpush1.msra.mxu0 %v1374
        %1384 = vmatprep.subr.mxu0 0.0
        %1385 = vmatpush1.msra.mxu0 %v1376
        %1386 = vmatprep.subr.mxu0 0.0
        %1387 = vmatpush1.msra.mxu0 0.0
        %1388 = vmatprep.subr.mxu0 0.0
        %1389 = vmatpush1.msra.mxu0 0.0
        %1390 = vmatprep.subr.mxu0 0.0
        %1391 = vmatpush1.msra.mxu0 0.0
        %1392 = vmatprep.subr.mxu0 0.0
        %1393 = vmatpush1.msra.mxu0 0.0
        %1394 = vmatprep.subr.mxu0 0.0
        %1395 = vmatpush1.msra.mxu0 0.0
        %1396 = vmatprep.subr.mxu0 0.0
        %1397 = vmatpush1.msra.mxu0 0.0
        %1398 = vmatprep.subr.mxu0 0.0
        %1399 = vmatpush1.msra.mxu0 0.0
        %1400 = vmatprep.subr.mxu0 0.0
        %1401 = vmatpush1.msra.mxu0 0.0
        %1402 = vmatprep.subr.mxu0 0.0
        %1403 = vmatpush1.msra.mxu0 0.0
        %1404 = vmatprep.subr.mxu0 0.0
        %1405 = vmatpush1.msra.mxu0 0.0
        %1406 = vmatprep.subr.mxu0 0.0
        %1407 = vmatpush1.msra.mxu0 0.0
        %1408 = vmatprep.subr.mxu0 0.0
        %1409 = vmatpush1.msra.mxu0 0.0
        %1410 = vmatprep.subr.mxu0 0.0
        %1411 = vmatpush1.msra.mxu0 0.0
        %1412 = vmatprep.subr.mxu0 0.0
        %1413 = vmatpush1.msra.mxu0 0.0
        %1414 = vmatprep.subr.mxu0 0.0
        %1415 = vmatpush1.msra.mxu0 0.0
        %1416 = vmatprep.subr.mxu0 0.0
        %1417 = vmatpush1.msra.mxu0 0.0
        %1418 = vmatprep.subr.mxu0 0.0
        %1419 = vmatpush1.msra.mxu0 0.0
        %1420 = vmatprep.subr.mxu0 0.0
        %1421 = vmatpush1.msra.mxu0 0.0
        %1422 = vmatprep.subr.mxu0 0.0
        %1423 = vmatpush1.msra.mxu0 0.0
        %1424 = vmatprep.subr.mxu0 0.0
        %1425 = vmatpush1.msra.mxu0 0.0
        %1426 = vmatprep.subr.mxu0 0.0
        %1427 = vmatpush1.msra.mxu0 0.0
        %1428 = vmatprep.subr.mxu0 0.0
        %1429 = vmatpush1.msra.mxu0 0.0
        %1430 = vmatprep.subr.mxu0 0.0
        %1431 = vmatpush1.msra.mxu0 0.0
        %1432 = vmatprep.subr.mxu0 0.0
        %1433 = vmatpush1.msra.mxu0 0.0
        %1434 = vmatprep.subr.mxu0 0.0
        %1435 = vmatpush1.msra.mxu0 0.0
        %1436 = vmatprep.subr.mxu0 0.0
        %1437 = vmatpush1.msra.mxu0 0.0
        %1438 = vmatprep.subr.mxu0 0.0
        %1439 = vmatpush1.msra.mxu0 0.0
        %1440 = vmatprep.subr.mxu0 0.0
        %1441 = vmatpush1.msra.mxu0 0.0
        %1442 = vmatprep.subr.mxu0 0.0
        %1443 = vmatpush1.msra.mxu0 0.0
        %1444 = vmatprep.subr.mxu0 0.0
        %1445 = vmatpush1.msra.mxu0 0.0
        %1446 = vmatprep.mubr.f32.mxu0 0.0
        %1447 = vmatmul.mubr.f32.gmra.mrb[0].mxu0 %v1380
        %v1448 = vpop.f32.mrb[0].mxu0
        %v1449 = vadd.f32 0.0, %v1448
        %v1450 = vpop.f32.mrb[0].mxu0
        %1451 = vdwg.mxu0
        %1454 = vrot.lane.b32.xlu0 %v848, 112
        %v1455 = vpop.permute.xlu0 %1454
        %1456 = vrot.lane.b32.xlu0 %v853, 112
        %v1457 = vpop.permute.xlu0 %1456
        %v1461 = vsel %vm856, %v1370, 0
        %1463 = vmatprep.subr.mxu0 0.0
        %1464 = vmatpush1.msra.mxu0 %v1455
        %1465 = vmatprep.subr.mxu0 0.0
        %1466 = vmatpush1.msra.mxu0 %v1457
        %1467 = vmatprep.subr.mxu0 0.0
        %1468 = vmatpush1.msra.mxu0 0.0
        %1469 = vmatprep.subr.mxu0 0.0
        %1470 = vmatpush1.msra.mxu0 0.0
        %1471 = vmatprep.subr.mxu0 0.0
        %1472 = vmatpush1.msra.mxu0 0.0
        %1473 = vmatprep.subr.mxu0 0.0
        %1474 = vmatpush1.msra.mxu0 0.0
        %1475 = vmatprep.subr.mxu0 0.0
        %1476 = vmatpush1.msra.mxu0 0.0
        %1477 = vmatprep.subr.mxu0 0.0
        %1478 = vmatpush1.msra.mxu0 0.0
        %1479 = vmatprep.subr.mxu0 0.0
        %1480 = vmatpush1.msra.mxu0 0.0
        %1481 = vmatprep.subr.mxu0 0.0
        %1482 = vmatpush1.msra.mxu0 0.0
        %1483 = vmatprep.subr.mxu0 0.0
        %1484 = vmatpush1.msra.mxu0 0.0
        %1485 = vmatprep.subr.mxu0 0.0
        %1486 = vmatpush1.msra.mxu0 0.0
        %1487 = vmatprep.subr.mxu0 0.0
        %1488 = vmatpush1.msra.mxu0 0.0
        %1489 = vmatprep.subr.mxu0 0.0
        %1490 = vmatpush1.msra.mxu0 0.0
        %1491 = vmatprep.subr.mxu0 0.0
        %1492 = vmatpush1.msra.mxu0 0.0
        %1493 = vmatprep.subr.mxu0 0.0
        %1494 = vmatpush1.msra.mxu0 0.0
        %1495 = vmatprep.subr.mxu0 0.0
        %1496 = vmatpush1.msra.mxu0 0.0
        %1497 = vmatprep.subr.mxu0 0.0
        %1498 = vmatpush1.msra.mxu0 0.0
        %1499 = vmatprep.subr.mxu0 0.0
        %1500 = vmatpush1.msra.mxu0 0.0
        %1501 = vmatprep.subr.mxu0 0.0
        %1502 = vmatpush1.msra.mxu0 0.0
        %1503 = vmatprep.subr.mxu0 0.0
        %1504 = vmatpush1.msra.mxu0 0.0
        %1505 = vmatprep.subr.mxu0 0.0
        %1506 = vmatpush1.msra.mxu0 0.0
        %1507 = vmatprep.subr.mxu0 0.0
        %1508 = vmatpush1.msra.mxu0 0.0
        %1509 = vmatprep.subr.mxu0 0.0
        %1510 = vmatpush1.msra.mxu0 0.0
        %1511 = vmatprep.subr.mxu0 0.0
        %1512 = vmatpush1.msra.mxu0 0.0
        %1513 = vmatprep.subr.mxu0 0.0
        %1514 = vmatpush1.msra.mxu0 0.0
        %1515 = vmatprep.subr.mxu0 0.0
        %1516 = vmatpush1.msra.mxu0 0.0
        %1517 = vmatprep.subr.mxu0 0.0
        %1518 = vmatpush1.msra.mxu0 0.0
        %1519 = vmatprep.subr.mxu0 0.0
        %1520 = vmatpush1.msra.mxu0 0.0
        %1521 = vmatprep.subr.mxu0 0.0
        %1522 = vmatpush1.msra.mxu0 0.0
        %1523 = vmatprep.subr.mxu0 0.0
        %1524 = vmatpush1.msra.mxu0 0.0
        %1525 = vmatprep.subr.mxu0 0.0
        %1526 = vmatpush1.msra.mxu0 0.0
        %1527 = vmatprep.mubr.f32.mxu0 0.0
        %1528 = vmatmul.mubr.f32.gmra.mrb[0].mxu0 %v1461
        %v1529 = vpop.f32.mrb[0].mxu0
        %v1530 = vadd.f32 0.0, %v1529
        %v1531 = vpop.f32.mrb[0].mxu0
        %1532 = vdwg.mxu0
        %1535 = vrot.lane.b32.xlu0 %v1449, 16
        %v1536 = vpop.permute.xlu0 %1535
        %1537 = vrot.lane.b32.xlu0 %v1530, 16
        %v1538 = vpop.permute.xlu0 %1537
        %vm1541 = vcmask 261248
        %1542 = vst.msk [vmem:[#allocation2] sm:$0xff] %vm1541, %v1536
        %1543 = vst.msk [vmem:[#allocation2 + $0x8] sm:$0xff] %vm1541, %v1538
        %1544 = vrot.lane.b32.xlu0 %v658, 96
        %v1545 = vpop.permute.xlu0 %1544
        %1546 = vrot.lane.b32.xlu0 %v749, 96
        %v1547 = vpop.permute.xlu0 %1546
        %1548 = vrot.lane.b32.xlu0 %v754, 96
        %v1549 = vpop.permute.xlu0 %1548
        %v1550 = vsel %vm856, %v1545, 0
        %v1552 = vsel %vm856, %v1547, 0
        %v1554 = vsel %vm856, %v1549, 0
        %1556 = vmatprep.subr.mxu0 0.0
        %1557 = vmatpush1.xpose.msra.mxu0 %v1552
        %1558 = vmatprep.subr.mxu0 0.0
        %1559 = vmatpush1.xpose.msra.mxu0 %v1554
        %1560 = vmatprep.subr.mxu0 0.0
        %1561 = vmatpush1.xpose.msra.mxu0 0.0
        %1562 = vmatprep.subr.mxu0 0.0
        %1563 = vmatpush1.xpose.msra.mxu0 0.0
        %1564 = vmatprep.subr.mxu0 0.0
        %1565 = vmatpush1.xpose.msra.mxu0 0.0
        %1566 = vmatprep.subr.mxu0 0.0
        %1567 = vmatpush1.xpose.msra.mxu0 0.0
        %1568 = vmatprep.subr.mxu0 0.0
        %1569 = vmatpush1.xpose.msra.mxu0 0.0
        %1570 = vmatprep.subr.mxu0 0.0
        %1571 = vmatpush1.xpose.msra.mxu0 0.0
        %1572 = vmatprep.subr.mxu0 0.0
        %1573 = vmatpush1.xpose.msra.mxu0 0.0
        %1574 = vmatprep.subr.mxu0 0.0
        %1575 = vmatpush1.xpose.msra.mxu0 0.0
        %1576 = vmatprep.subr.mxu0 0.0
        %1577 = vmatpush1.xpose.msra.mxu0 0.0
        %1578 = vmatprep.subr.mxu0 0.0
        %1579 = vmatpush1.xpose.msra.mxu0 0.0
        %1580 = vmatprep.subr.mxu0 0.0
        %1581 = vmatpush1.xpose.msra.mxu0 0.0
        %1582 = vmatprep.subr.mxu0 0.0
        %1583 = vmatpush1.xpose.msra.mxu0 0.0
        %1584 = vmatprep.subr.mxu0 0.0
        %1585 = vmatpush1.xpose.msra.mxu0 0.0
        %1586 = vmatprep.subr.mxu0 0.0
        %1587 = vmatpush1.xpose.msra.mxu0 0.0
        %1588 = vmatprep.subr.mxu0 0.0
        %1589 = vmatpush1.xpose.msra.mxu0 0.0
        %1590 = vmatprep.subr.mxu0 0.0
        %1591 = vmatpush1.xpose.msra.mxu0 0.0
        %1592 = vmatprep.subr.mxu0 0.0
        %1593 = vmatpush1.xpose.msra.mxu0 0.0
        %1594 = vmatprep.subr.mxu0 0.0
        %1595 = vmatpush1.xpose.msra.mxu0 0.0
        %1596 = vmatprep.subr.mxu0 0.0
        %1597 = vmatpush1.xpose.msra.mxu0 0.0
        %1598 = vmatprep.subr.mxu0 0.0
        %1599 = vmatpush1.xpose.msra.mxu0 0.0
        %1600 = vmatprep.subr.mxu0 0.0
        %1601 = vmatpush1.xpose.msra.mxu0 0.0
        %1602 = vmatprep.subr.mxu0 0.0
        %1603 = vmatpush1.xpose.msra.mxu0 0.0
        %1604 = vmatprep.subr.mxu0 0.0
        %1605 = vmatpush1.xpose.msra.mxu0 0.0
        %1606 = vmatprep.subr.mxu0 0.0
        %1607 = vmatpush1.xpose.msra.mxu0 0.0
        %1608 = vmatprep.subr.mxu0 0.0
        %1609 = vmatpush1.xpose.msra.mxu0 0.0
        %1610 = vmatprep.subr.mxu0 0.0
        %1611 = vmatpush1.xpose.msra.mxu0 0.0
        %1612 = vmatprep.subr.mxu0 0.0
        %1613 = vmatpush1.xpose.msra.mxu0 0.0
        %1614 = vmatprep.subr.mxu0 0.0
        %1615 = vmatpush1.xpose.msra.mxu0 0.0
        %1616 = vmatprep.subr.mxu0 0.0
        %1617 = vmatpush1.xpose.msra.mxu0 0.0
        %1618 = vmatprep.subr.mxu0 0.0
        %1619 = vmatpush1.xpose.msra.mxu0 0.0
        %1620 = vmatprep.mubr.f32.mxu0 0.0
        %1621 = vmatmul.mubr.f32.gmra.mrb[0].mxu0 %v1550
        %v1622 = vpop.f32.mrb[0].mxu0
        %v1623 = vadd.f32 0.0, %v1622
        %v1624 = vpop.f32.mrb[0].mxu0
        %1625 = vdwg.mxu0
        %1626 = vrot.lane.b32.xlu0 %v663, 96
        %v1627 = vpop.permute.xlu0 %1626
        %1628 = vrot.lane.b32.xlu0 %v759, 96
        %v1629 = vpop.permute.xlu0 %1628
        %1630 = vrot.lane.b32.xlu0 %v764, 96
        %v1631 = vpop.permute.xlu0 %1630
        %v1632 = vsel %vm856, %v1627, 0
        %v1634 = vsel %vm856, %v1629, 0
        %v1636 = vsel %vm856, %v1631, 0
        %1638 = vmatprep.subr.mxu0 0.0
        %1639 = vmatpush1.xpose.msra.mxu0 %v1634
        %1640 = vmatprep.subr.mxu0 0.0
        %1641 = vmatpush1.xpose.msra.mxu0 %v1636
        %1642 = vmatprep.subr.mxu0 0.0
        %1643 = vmatpush1.xpose.msra.mxu0 0.0
        %1644 = vmatprep.subr.mxu0 0.0
        %1645 = vmatpush1.xpose.msra.mxu0 0.0
        %1646 = vmatprep.subr.mxu0 0.0
        %1647 = vmatpush1.xpose.msra.mxu0 0.0
        %1648 = vmatprep.subr.mxu0 0.0
        %1649 = vmatpush1.xpose.msra.mxu0 0.0
        %1650 = vmatprep.subr.mxu0 0.0
        %1651 = vmatpush1.xpose.msra.mxu0 0.0
        %1652 = vmatprep.subr.mxu0 0.0
        %1653 = vmatpush1.xpose.msra.mxu0 0.0
        %1654 = vmatprep.subr.mxu0 0.0
        %1655 = vmatpush1.xpose.msra.mxu0 0.0
        %1656 = vmatprep.subr.mxu0 0.0
        %1657 = vmatpush1.xpose.msra.mxu0 0.0
        %1658 = vmatprep.subr.mxu0 0.0
        %1659 = vmatpush1.xpose.msra.mxu0 0.0
        %1660 = vmatprep.subr.mxu0 0.0
        %1661 = vmatpush1.xpose.msra.mxu0 0.0
        %1662 = vmatprep.subr.mxu0 0.0
        %1663 = vmatpush1.xpose.msra.mxu0 0.0
        %1664 = vmatprep.subr.mxu0 0.0
        %1665 = vmatpush1.xpose.msra.mxu0 0.0
        %1666 = vmatprep.subr.mxu0 0.0
        %1667 = vmatpush1.xpose.msra.mxu0 0.0
        %1668 = vmatprep.subr.mxu0 0.0
        %1669 = vmatpush1.xpose.msra.mxu0 0.0
        %1670 = vmatprep.subr.mxu0 0.0
        %1671 = vmatpush1.xpose.msra.mxu0 0.0
        %1672 = vmatprep.subr.mxu0 0.0
        %1673 = vmatpush1.xpose.msra.mxu0 0.0
        %1674 = vmatprep.subr.mxu0 0.0
        %1675 = vmatpush1.xpose.msra.mxu0 0.0
        %1676 = vmatprep.subr.mxu0 0.0
        %1677 = vmatpush1.xpose.msra.mxu0 0.0
        %1678 = vmatprep.subr.mxu0 0.0
        %1679 = vmatpush1.xpose.msra.mxu0 0.0
        %1680 = vmatprep.subr.mxu0 0.0
        %1681 = vmatpush1.xpose.msra.mxu0 0.0
        %1682 = vmatprep.subr.mxu0 0.0
        %1683 = vmatpush1.xpose.msra.mxu0 0.0
        %1684 = vmatprep.subr.mxu0 0.0
        %1685 = vmatpush1.xpose.msra.mxu0 0.0
        %1686 = vmatprep.subr.mxu0 0.0
        %1687 = vmatpush1.xpose.msra.mxu0 0.0
        %1688 = vmatprep.subr.mxu0 0.0
        %1689 = vmatpush1.xpose.msra.mxu0 0.0
        %1690 = vmatprep.subr.mxu0 0.0
        %1691 = vmatpush1.xpose.msra.mxu0 0.0
        %1692 = vmatprep.subr.mxu0 0.0
        %1693 = vmatpush1.xpose.msra.mxu0 0.0
        %1694 = vmatprep.subr.mxu0 0.0
        %1695 = vmatpush1.xpose.msra.mxu0 0.0
        %1696 = vmatprep.subr.mxu0 0.0
        %1697 = vmatpush1.xpose.msra.mxu0 0.0
        %1698 = vmatprep.subr.mxu0 0.0
        %1699 = vmatpush1.xpose.msra.mxu0 0.0
        %1700 = vmatprep.subr.mxu0 0.0
        %1701 = vmatpush1.xpose.msra.mxu0 0.0
        %1702 = vmatprep.mubr.f32.mxu0 0.0
        %1703 = vmatmul.mubr.f32.gmra.mrb[0].mxu0 %v1632
        %v1704 = vpop.f32.mrb[0].mxu0
        %v1705 = vadd.f32 0.0, %v1704
        %v1706 = vpop.f32.mrb[0].mxu0
        %1707 = vdwg.mxu0
        %v1708 = vsel %vm856, %v1623, -inf
        %1709 = vmax.xlane.f32.xlu0 %v1708
        %v1710 = vpop.xlane.xlu0 %1709
        %v1711 = vsel %vm856, %v1705, -inf
        %1712 = vmax.xlane.f32.xlu0 %v1711
        %v1713 = vpop.xlane.xlu0 %1712
        %v1714 = vsub.f32 %v1623, %v1710
        %v1715 = vsub.f32 %v1705, %v1713
        %v1716 = vmul.f32 %v1714, 1.442695
        %v1717 = vpow.pop %v1716
        %v1718 = vmul.f32 %v1715, 1.442695
        %v1719 = vpow.pop %v1718
        %v1720 = vsel %vm856, %v1717, 0.0
        %1721 = vadd.xlane.f32.xlu0 %v1720
        %v1722 = vpop.xlane.xlu0 %1721
        %v1723 = vsel %vm856, %v1719, 0.0
        %1724 = vadd.xlane.f32.xlu0 %v1723
        %v1725 = vpop.xlane.xlu0 %1724
        %v1726 = vrcp.pop %v1722
        %v1727 = vrcp.pop %v1725
        %v1728 = vmul.f32 %v1717, %v1726
        %v1729 = vmul.f32 %v1719, %v1727
        %1730 = vrot.lane.b32.xlu0 %v838, 96
        %v1731 = vpop.permute.xlu0 %1730
        %1732 = vrot.lane.b32.xlu0 %v843, 96
        %v1733 = vpop.permute.xlu0 %1732
        %v1737 = vsel %vm856, %v1728, 0
        %1739 = vmatprep.subr.mxu0 0.0
        %1740 = vmatpush1.msra.mxu0 %v1731
        %1741 = vmatprep.subr.mxu0 0.0
        %1742 = vmatpush1.msra.mxu0 %v1733
        %1743 = vmatprep.subr.mxu0 0.0
        %1744 = vmatpush1.msra.mxu0 0.0
        %1745 = vmatprep.subr.mxu0 0.0
        %1746 = vmatpush1.msra.mxu0 0.0
        %1747 = vmatprep.subr.mxu0 0.0
        %1748 = vmatpush1.msra.mxu0 0.0
        %1749 = vmatprep.subr.mxu0 0.0
        %1750 = vmatpush1.msra.mxu0 0.0
        %1751 = vmatprep.subr.mxu0 0.0
        %1752 = vmatpush1.msra.mxu0 0.0
        %1753 = vmatprep.subr.mxu0 0.0
        %1754 = vmatpush1.msra.mxu0 0.0
        %1755 = vmatprep.subr.mxu0 0.0
        %1756 = vmatpush1.msra.mxu0 0.0
        %1757 = vmatprep.subr.mxu0 0.0
        %1758 = vmatpush1.msra.mxu0 0.0
        %1759 = vmatprep.subr.mxu0 0.0
        %1760 = vmatpush1.msra.mxu0 0.0
        %1761 = vmatprep.subr.mxu0 0.0
        %1762 = vmatpush1.msra.mxu0 0.0
        %1763 = vmatprep.subr.mxu0 0.0
        %1764 = vmatpush1.msra.mxu0 0.0
        %1765 = vmatprep.subr.mxu0 0.0
        %1766 = vmatpush1.msra.mxu0 0.0
        %1767 = vmatprep.subr.mxu0 0.0
        %1768 = vmatpush1.msra.mxu0 0.0
        %1769 = vmatprep.subr.mxu0 0.0
        %1770 = vmatpush1.msra.mxu0 0.0
        %1771 = vmatprep.subr.mxu0 0.0
        %1772 = vmatpush1.msra.mxu0 0.0
        %1773 = vmatprep.subr.mxu0 0.0
        %1774 = vmatpush1.msra.mxu0 0.0
        %1775 = vmatprep.subr.mxu0 0.0
        %1776 = vmatpush1.msra.mxu0 0.0
        %1777 = vmatprep.subr.mxu0 0.0
        %1778 = vmatpush1.msra.mxu0 0.0
        %1779 = vmatprep.subr.mxu0 0.0
        %1780 = vmatpush1.msra.mxu0 0.0
        %1781 = vmatprep.subr.mxu0 0.0
        %1782 = vmatpush1.msra.mxu0 0.0
        %1783 = vmatprep.subr.mxu0 0.0
        %1784 = vmatpush1.msra.mxu0 0.0
        %1785 = vmatprep.subr.mxu0 0.0
        %1786 = vmatpush1.msra.mxu0 0.0
        %1787 = vmatprep.subr.mxu0 0.0
        %1788 = vmatpush1.msra.mxu0 0.0
        %1789 = vmatprep.subr.mxu0 0.0
        %1790 = vmatpush1.msra.mxu0 0.0
        %1791 = vmatprep.subr.mxu0 0.0
        %1792 = vmatpush1.msra.mxu0 0.0
        %1793 = vmatprep.subr.mxu0 0.0
        %1794 = vmatpush1.msra.mxu0 0.0
        %1795 = vmatprep.subr.mxu0 0.0
        %1796 = vmatpush1.msra.mxu0 0.0
        %1797 = vmatprep.subr.mxu0 0.0
        %1798 = vmatpush1.msra.mxu0 0.0
        %1799 = vmatprep.subr.mxu0 0.0
        %1800 = vmatpush1.msra.mxu0 0.0
        %1801 = vmatprep.subr.mxu0 0.0
        %1802 = vmatpush1.msra.mxu0 0.0
        %1803 = vmatprep.mubr.f32.mxu0 0.0
        %1804 = vmatmul.mubr.f32.gmra.mrb[0].mxu0 %v1737
        %v1805 = vpop.f32.mrb[0].mxu0
        %v1806 = vadd.f32 0.0, %v1805
        %v1807 = vpop.f32.mrb[0].mxu0
        %1808 = vdwg.mxu0
        %1809 = vrot.lane.b32.xlu0 %v848, 96
        %v1810 = vpop.permute.xlu0 %1809
        %1811 = vrot.lane.b32.xlu0 %v853, 96
        %v1812 = vpop.permute.xlu0 %1811
        %v1816 = vsel %vm856, %v1729, 0
        %1818 = vmatprep.subr.mxu0 0.0
        %1819 = vmatpush1.msra.mxu0 %v1810
        %1820 = vmatprep.subr.mxu0 0.0
        %1821 = vmatpush1.msra.mxu0 %v1812
        %1822 = vmatprep.subr.mxu0 0.0
        %1823 = vmatpush1.msra.mxu0 0.0
        %1824 = vmatprep.subr.mxu0 0.0
        %1825 = vmatpush1.msra.mxu0 0.0
        %1826 = vmatprep.subr.mxu0 0.0
        %1827 = vmatpush1.msra.mxu0 0.0
        %1828 = vmatprep.subr.mxu0 0.0
        %1829 = vmatpush1.msra.mxu0 0.0
        %1830 = vmatprep.subr.mxu0 0.0
        %1831 = vmatpush1.msra.mxu0 0.0
        %1832 = vmatprep.subr.mxu0 0.0
        %1833 = vmatpush1.msra.mxu0 0.0
        %1834 = vmatprep.subr.mxu0 0.0
        %1835 = vmatpush1.msra.mxu0 0.0
        %1836 = vmatprep.subr.mxu0 0.0
        %1837 = vmatpush1.msra.mxu0 0.0
        %1838 = vmatprep.subr.mxu0 0.0
        %1839 = vmatpush1.msra.mxu0 0.0
        %1840 = vmatprep.subr.mxu0 0.0
        %1841 = vmatpush1.msra.mxu0 0.0
        %1842 = vmatprep.subr.mxu0 0.0
        %1843 = vmatpush1.msra.mxu0 0.0
        %1844 = vmatprep.subr.mxu0 0.0
        %1845 = vmatpush1.msra.mxu0 0.0
        %1846 = vmatprep.subr.mxu0 0.0
        %1847 = vmatpush1.msra.mxu0 0.0
        %1848 = vmatprep.subr.mxu0 0.0
        %1849 = vmatpush1.msra.mxu0 0.0
        %1850 = vmatprep.subr.mxu0 0.0
        %1851 = vmatpush1.msra.mxu0 0.0
        %1852 = vmatprep.subr.mxu0 0.0
        %1853 = vmatpush1.msra.mxu0 0.0
        %1854 = vmatprep.subr.mxu0 0.0
        %1855 = vmatpush1.msra.mxu0 0.0
        %1856 = vmatprep.subr.mxu0 0.0
        %1857 = vmatpush1.msra.mxu0 0.0
        %1858 = vmatprep.subr.mxu0 0.0
        %1859 = vmatpush1.msra.mxu0 0.0
        %1860 = vmatprep.subr.mxu0 0.0
        %1861 = vmatpush1.msra.mxu0 0.0
        %1862 = vmatprep.subr.mxu0 0.0
        %1863 = vmatpush1.msra.mxu0 0.0
        %1864 = vmatprep.subr.mxu0 0.0
        %1865 = vmatpush1.msra.mxu0 0.0
        %1866 = vmatprep.subr.mxu0 0.0
        %1867 = vmatpush1.msra.mxu0 0.0
        %1868 = vmatprep.subr.mxu0 0.0
        %1869 = vmatpush1.msra.mxu0 0.0
        %1870 = vmatprep.subr.mxu0 0.0
        %1871 = vmatpush1.msra.mxu0 0.0
        %1872 = vmatprep.subr.mxu0 0.0
        %1873 = vmatpush1.msra.mxu0 0.0
        %1874 = vmatprep.subr.mxu0 0.0
        %1875 = vmatpush1.msra.mxu0 0.0
        %1876 = vmatprep.subr.mxu0 0.0
        %1877 = vmatpush1.msra.mxu0 0.0
        %1878 = vmatprep.subr.mxu0 0.0
        %1879 = vmatpush1.msra.mxu0 0.0
        %1880 = vmatprep.subr.mxu0 0.0
        %1881 = vmatpush1.msra.mxu0 0.0
        %1882 = vmatprep.mubr.f32.mxu0 0.0
        %1883 = vmatmul.mubr.f32.gmra.mrb[0].mxu0 %v1816
        %v1884 = vpop.f32.mrb[0].mxu0
        %v1885 = vadd.f32 0.0, %v1884
        %v1886 = vpop.f32.mrb[0].mxu0
        %1887 = vdwg.mxu0
        %1890 = vrot.lane.b32.xlu0 %v1806, 32
        %v1891 = vpop.permute.xlu0 %1890
        %1892 = vrot.lane.b32.xlu0 %v1885, 32
        %v1893 = vpop.permute.xlu0 %1892
        %vm1896 = vcmask 392448
        %1897 = vst.msk [vmem:[#allocation2] sm:$0xff] %vm1896, %v1891
        %1898 = vst.msk [vmem:[#allocation2 + $0x8] sm:$0xff] %vm1896, %v1893
        %1899 = vrot.lane.b32.xlu0 %v658, 80
        %v1900 = vpop.permute.xlu0 %1899
        %1901 = vrot.lane.b32.xlu0 %v749, 80
        %v1902 = vpop.permute.xlu0 %1901
        %1903 = vrot.lane.b32.xlu0 %v754, 80
        %v1904 = vpop.permute.xlu0 %1903
        %v1905 = vsel %vm856, %v1900, 0
        %v1907 = vsel %vm856, %v1902, 0
        %v1909 = vsel %vm856, %v1904, 0
        %1911 = vmatprep.subr.mxu0 0.0
        %1912 = vmatpush1.xpose.msra.mxu0 %v1907
        %1913 = vmatprep.subr.mxu0 0.0
        %1914 = vmatpush1.xpose.msra.mxu0 %v1909
        %1915 = vmatprep.subr.mxu0 0.0
        %1916 = vmatpush1.xpose.msra.mxu0 0.0
        %1917 = vmatprep.subr.mxu0 0.0
        %1918 = vmatpush1.xpose.msra.mxu0 0.0
        %1919 = vmatprep.subr.mxu0 0.0
        %1920 = vmatpush1.xpose.msra.mxu0 0.0
        %1921 = vmatprep.subr.mxu0 0.0
        %1922 = vmatpush1.xpose.msra.mxu0 0.0
        %1923 = vmatprep.subr.mxu0 0.0
        %1924 = vmatpush1.xpose.msra.mxu0 0.0
        %1925 = vmatprep.subr.mxu0 0.0
        %1926 = vmatpush1.xpose.msra.mxu0 0.0
        %1927 = vmatprep.subr.mxu0 0.0
        %1928 = vmatpush1.xpose.msra.mxu0 0.0
        %1929 = vmatprep.subr.mxu0 0.0
        %1930 = vmatpush1.xpose.msra.mxu0 0.0
        %1931 = vmatprep.subr.mxu0 0.0
        %1932 = vmatpush1.xpose.msra.mxu0 0.0
        %1933 = vmatprep.subr.mxu0 0.0
        %1934 = vmatpush1.xpose.msra.mxu0 0.0
        %1935 = vmatprep.subr.mxu0 0.0
        %1936 = vmatpush1.xpose.msra.mxu0 0.0
        %1937 = vmatprep.subr.mxu0 0.0
        %1938 = vmatpush1.xpose.msra.mxu0 0.0
        %1939 = vmatprep.subr.mxu0 0.0
        %1940 = vmatpush1.xpose.msra.mxu0 0.0
        %1941 = vmatprep.subr.mxu0 0.0
        %1942 = vmatpush1.xpose.msra.mxu0 0.0
        %1943 = vmatprep.subr.mxu0 0.0
        %1944 = vmatpush1.xpose.msra.mxu0 0.0
        %1945 = vmatprep.subr.mxu0 0.0
        %1946 = vmatpush1.xpose.msra.mxu0 0.0
        %1947 = vmatprep.subr.mxu0 0.0
        %1948 = vmatpush1.xpose.msra.mxu0 0.0
        %1949 = vmatprep.subr.mxu0 0.0
        %1950 = vmatpush1.xpose.msra.mxu0 0.0
        %1951 = vmatprep.subr.mxu0 0.0
        %1952 = vmatpush1.xpose.msra.mxu0 0.0
        %1953 = vmatprep.subr.mxu0 0.0
        %1954 = vmatpush1.xpose.msra.mxu0 0.0
        %1955 = vmatprep.subr.mxu0 0.0
        %1956 = vmatpush1.xpose.msra.mxu0 0.0
        %1957 = vmatprep.subr.mxu0 0.0
        %1958 = vmatpush1.xpose.msra.mxu0 0.0
        %1959 = vmatprep.subr.mxu0 0.0
        %1960 = vmatpush1.xpose.msra.mxu0 0.0
        %1961 = vmatprep.subr.mxu0 0.0
        %1962 = vmatpush1.xpose.msra.mxu0 0.0
        %1963 = vmatprep.subr.mxu0 0.0
        %1964 = vmatpush1.xpose.msra.mxu0 0.0
        %1965 = vmatprep.subr.mxu0 0.0
        %1966 = vmatpush1.xpose.msra.mxu0 0.0
        %1967 = vmatprep.subr.mxu0 0.0
        %1968 = vmatpush1.xpose.msra.mxu0 0.0
        %1969 = vmatprep.subr.mxu0 0.0
        %1970 = vmatpush1.xpose.msra.mxu0 0.0
        %1971 = vmatprep.subr.mxu0 0.0
        %1972 = vmatpush1.xpose.msra.mxu0 0.0
        %1973 = vmatprep.subr.mxu0 0.0
        %1974 = vmatpush1.xpose.msra.mxu0 0.0
        %1975 = vmatprep.mubr.f32.mxu0 0.0
        %1976 = vmatmul.mubr.f32.gmra.mrb[0].mxu0 %v1905
        %v1977 = vpop.f32.mrb[0].mxu0
        %v1978 = vadd.f32 0.0, %v1977
        %v1979 = vpop.f32.mrb[0].mxu0
        %1980 = vdwg.mxu0
        %1981 = vrot.lane.b32.xlu0 %v663, 80
        %v1982 = vpop.permute.xlu0 %1981
        %1983 = vrot.lane.b32.xlu0 %v759, 80
        %v1984 = vpop.permute.xlu0 %1983
        %1985 = vrot.lane.b32.xlu0 %v764, 80
        %v1986 = vpop.permute.xlu0 %1985
        %v1987 = vsel %vm856, %v1982, 0
        %v1989 = vsel %vm856, %v1984, 0
        %v1991 = vsel %vm856, %v1986, 0
        %1993 = vmatprep.subr.mxu0 0.0
        %1994 = vmatpush1.xpose.msra.mxu0 %v1989
        %1995 = vmatprep.subr.mxu0 0.0
        %1996 = vmatpush1.xpose.msra.mxu0 %v1991
        %1997 = vmatprep.subr.mxu0 0.0
        %1998 = vmatpush1.xpose.msra.mxu0 0.0
        %1999 = vmatprep.subr.mxu0 0.0
        %2000 = vmatpush1.xpose.msra.mxu0 0.0
        %2001 = vmatprep.subr.mxu0 0.0
        %2002 = vmatpush1.xpose.msra.mxu0 0.0
        %2003 = vmatprep.subr.mxu0 0.0
        %2004 = vmatpush1.xpose.msra.mxu0 0.0
        %2005 = vmatprep.subr.mxu0 0.0
        %2006 = vmatpush1.xpose.msra.mxu0 0.0
        %2007 = vmatprep.subr.mxu0 0.0
        %2008 = vmatpush1.xpose.msra.mxu0 0.0
        %2009 = vmatprep.subr.mxu0 0.0
        %2010 = vmatpush1.xpose.msra.mxu0 0.0
        %2011 = vmatprep.subr.mxu0 0.0
        %2012 = vmatpush1.xpose.msra.mxu0 0.0
        %2013 = vmatprep.subr.mxu0 0.0
        %2014 = vmatpush1.xpose.msra.mxu0 0.0
        %2015 = vmatprep.subr.mxu0 0.0
        %2016 = vmatpush1.xpose.msra.mxu0 0.0
        %2017 = vmatprep.subr.mxu0 0.0
        %2018 = vmatpush1.xpose.msra.mxu0 0.0
        %2019 = vmatprep.subr.mxu0 0.0
        %2020 = vmatpush1.xpose.msra.mxu0 0.0
        %2021 = vmatprep.subr.mxu0 0.0
        %2022 = vmatpush1.xpose.msra.mxu0 0.0
        %2023 = vmatprep.subr.mxu0 0.0
        %2024 = vmatpush1.xpose.msra.mxu0 0.0
        %2025 = vmatprep.subr.mxu0 0.0
        %2026 = vmatpush1.xpose.msra.mxu0 0.0
        %2027 = vmatprep.subr.mxu0 0.0
        %2028 = vmatpush1.xpose.msra.mxu0 0.0
        %2029 = vmatprep.subr.mxu0 0.0
        %2030 = vmatpush1.xpose.msra.mxu0 0.0
        %2031 = vmatprep.subr.mxu0 0.0
        %2032 = vmatpush1.xpose.msra.mxu0 0.0
        %2033 = vmatprep.subr.mxu0 0.0
        %2034 = vmatpush1.xpose.msra.mxu0 0.0
        %2035 = vmatprep.subr.mxu0 0.0
        %2036 = vmatpush1.xpose.msra.mxu0 0.0
        %2037 = vmatprep.subr.mxu0 0.0
        %2038 = vmatpush1.xpose.msra.mxu0 0.0
        %2039 = vmatprep.subr.mxu0 0.0
        %2040 = vmatpush1.xpose.msra.mxu0 0.0
        %2041 = vmatprep.subr.mxu0 0.0
        %2042 = vmatpush1.xpose.msra.mxu0 0.0
        %2043 = vmatprep.subr.mxu0 0.0
        %2044 = vmatpush1.xpose.msra.mxu0 0.0
        %2045 = vmatprep.subr.mxu0 0.0
        %2046 = vmatpush1.xpose.msra.mxu0 0.0
        %2047 = vmatprep.subr.mxu0 0.0
        %2048 = vmatpush1.xpose.msra.mxu0 0.0
        %2049 = vmatprep.subr.mxu0 0.0
        %2050 = vmatpush1.xpose.msra.mxu0 0.0
        %2051 = vmatprep.subr.mxu0 0.0
        %2052 = vmatpush1.xpose.msra.mxu0 0.0
        %2053 = vmatprep.subr.mxu0 0.0
        %2054 = vmatpush1.xpose.msra.mxu0 0.0
        %2055 = vmatprep.subr.mxu0 0.0
        %2056 = vmatpush1.xpose.msra.mxu0 0.0
        %2057 = vmatprep.mubr.f32.mxu0 0.0
        %2058 = vmatmul.mubr.f32.gmra.mrb[0].mxu0 %v1987
        %v2059 = vpop.f32.mrb[0].mxu0
        %v2060 = vadd.f32 0.0, %v2059
        %v2061 = vpop.f32.mrb[0].mxu0
        %2062 = vdwg.mxu0
        %v2063 = vsel %vm856, %v1978, -inf
        %2064 = vmax.xlane.f32.xlu0 %v2063
        %v2065 = vpop.xlane.xlu0 %2064
        %v2066 = vsel %vm856, %v2060, -inf
        %2067 = vmax.xlane.f32.xlu0 %v2066
        %v2068 = vpop.xlane.xlu0 %2067
        %v2069 = vsub.f32 %v1978, %v2065
        %v2070 = vsub.f32 %v2060, %v2068
        %v2071 = vmul.f32 %v2069, 1.442695
        %v2072 = vpow.pop %v2071
        %v2073 = vmul.f32 %v2070, 1.442695
        %v2074 = vpow.pop %v2073
        %v2075 = vsel %vm856, %v2072, 0.0
        %2076 = vadd.xlane.f32.xlu0 %v2075
        %v2077 = vpop.xlane.xlu0 %2076
        %v2078 = vsel %vm856, %v2074, 0.0
        %2079 = vadd.xlane.f32.xlu0 %v2078
        %v2080 = vpop.xlane.xlu0 %2079
        %v2081 = vrcp.pop %v2077
        %v2082 = vrcp.pop %v2080
        %v2083 = vmul.f32 %v2072, %v2081
        %v2084 = vmul.f32 %v2074, %v2082
        %2085 = vrot.lane.b32.xlu0 %v838, 80
        %v2086 = vpop.permute.xlu0 %2085
        %2087 = vrot.lane.b32.xlu0 %v843, 80
        %v2088 = vpop.permute.xlu0 %2087
        %v2092 = vsel %vm856, %v2083, 0
        %2094 = vmatprep.subr.mxu0 0.0
        %2095 = vmatpush1.msra.mxu0 %v2086
        %2096 = vmatprep.subr.mxu0 0.0
        %2097 = vmatpush1.msra.mxu0 %v2088
        %2098 = vmatprep.subr.mxu0 0.0
        %2099 = vmatpush1.msra.mxu0 0.0
        %2100 = vmatprep.subr.mxu0 0.0
        %2101 = vmatpush1.msra.mxu0 0.0
        %2102 = vmatprep.subr.mxu0 0.0
        %2103 = vmatpush1.msra.mxu0 0.0
        %2104 = vmatprep.subr.mxu0 0.0
        %2105 = vmatpush1.msra.mxu0 0.0
        %2106 = vmatprep.subr.mxu0 0.0
        %2107 = vmatpush1.msra.mxu0 0.0
        %2108 = vmatprep.subr.mxu0 0.0
        %2109 = vmatpush1.msra.mxu0 0.0
        %2110 = vmatprep.subr.mxu0 0.0
        %2111 = vmatpush1.msra.mxu0 0.0
        %2112 = vmatprep.subr.mxu0 0.0
        %2113 = vmatpush1.msra.mxu0 0.0
        %2114 = vmatprep.subr.mxu0 0.0
        %2115 = vmatpush1.msra.mxu0 0.0
        %2116 = vmatprep.subr.mxu0 0.0
        %2117 = vmatpush1.msra.mxu0 0.0
        %2118 = vmatprep.subr.mxu0 0.0
        %2119 = vmatpush1.msra.mxu0 0.0
        %2120 = vmatprep.subr.mxu0 0.0
        %2121 = vmatpush1.msra.mxu0 0.0
        %2122 = vmatprep.subr.mxu0 0.0
        %2123 = vmatpush1.msra.mxu0 0.0
        %2124 = vmatprep.subr.mxu0 0.0
        %2125 = vmatpush1.msra.mxu0 0.0
        %2126 = vmatprep.subr.mxu0 0.0
        %2127 = vmatpush1.msra.mxu0 0.0
        %2128 = vmatprep.subr.mxu0 0.0
        %2129 = vmatpush1.msra.mxu0 0.0
        %2130 = vmatprep.subr.mxu0 0.0
        %2131 = vmatpush1.msra.mxu0 0.0
        %2132 = vmatprep.subr.mxu0 0.0
        %2133 = vmatpush1.msra.mxu0 0.0
        %2134 = vmatprep.subr.mxu0 0.0
        %2135 = vmatpush1.msra.mxu0 0.0
        %2136 = vmatprep.subr.mxu0 0.0
        %2137 = vmatpush1.msra.mxu0 0.0
        %2138 = vmatprep.subr.mxu0 0.0
        %2139 = vmatpush1.msra.mxu0 0.0
        %2140 = vmatprep.subr.mxu0 0.0
        %2141 = vmatpush1.msra.mxu0 0.0
        %2142 = vmatprep.subr.mxu0 0.0
        %2143 = vmatpush1.msra.mxu0 0.0
        %2144 = vmatprep.subr.mxu0 0.0
        %2145 = vmatpush1.msra.mxu0 0.0
        %2146 = vmatprep.subr.mxu0 0.0
        %2147 = vmatpush1.msra.mxu0 0.0
        %2148 = vmatprep.subr.mxu0 0.0
        %2149 = vmatpush1.msra.mxu0 0.0
        %2150 = vmatprep.subr.mxu0 0.0
        %2151 = vmatpush1.msra.mxu0 0.0
        %2152 = vmatprep.subr.mxu0 0.0
        %2153 = vmatpush1.msra.mxu0 0.0
        %2154 = vmatprep.subr.mxu0 0.0
        %2155 = vmatpush1.msra.mxu0 0.0
        %2156 = vmatprep.subr.mxu0 0.0
        %2157 = vmatpush1.msra.mxu0 0.0
        %2158 = vmatprep.mubr.f32.mxu0 0.0
        %2159 = vmatmul.mubr.f32.gmra.mrb[0].mxu0 %v2092
        %v2160 = vpop.f32.mrb[0].mxu0
        %v2161 = vadd.f32 0.0, %v2160
        %v2162 = vpop.f32.mrb[0].mxu0
        %2163 = vdwg.mxu0
        %2164 = vrot.lane.b32.xlu0 %v848, 80
        %v2165 = vpop.permute.xlu0 %2164
        %2166 = vrot.lane.b32.xlu0 %v853, 80
        %v2167 = vpop.permute.xlu0 %2166
        %v2171 = vsel %vm856, %v2084, 0
        %2173 = vmatprep.subr.mxu0 0.0
        %2174 = vmatpush1.msra.mxu0 %v2165
        %2175 = vmatprep.subr.mxu0 0.0
        %2176 = vmatpush1.msra.mxu0 %v2167
        %2177 = vmatprep.subr.mxu0 0.0
        %2178 = vmatpush1.msra.mxu0 0.0
        %2179 = vmatprep.subr.mxu0 0.0
        %2180 = vmatpush1.msra.mxu0 0.0
        %2181 = vmatprep.subr.mxu0 0.0
        %2182 = vmatpush1.msra.mxu0 0.0
        %2183 = vmatprep.subr.mxu0 0.0
        %2184 = vmatpush1.msra.mxu0 0.0
        %2185 = vmatprep.subr.mxu0 0.0
        %2186 = vmatpush1.msra.mxu0 0.0
        %2187 = vmatprep.subr.mxu0 0.0
        %2188 = vmatpush1.msra.mxu0 0.0
        %2189 = vmatprep.subr.mxu0 0.0
        %2190 = vmatpush1.msra.mxu0 0.0
        %2191 = vmatprep.subr.mxu0 0.0
        %2192 = vmatpush1.msra.mxu0 0.0
        %2193 = vmatprep.subr.mxu0 0.0
        %2194 = vmatpush1.msra.mxu0 0.0
        %2195 = vmatprep.subr.mxu0 0.0
        %2196 = vmatpush1.msra.mxu0 0.0
        %2197 = vmatprep.subr.mxu0 0.0
        %2198 = vmatpush1.msra.mxu0 0.0
        %2199 = vmatprep.subr.mxu0 0.0
        %2200 = vmatpush1.msra.mxu0 0.0
        %2201 = vmatprep.subr.mxu0 0.0
        %2202 = vmatpush1.msra.mxu0 0.0
        %2203 = vmatprep.subr.mxu0 0.0
        %2204 = vmatpush1.msra.mxu0 0.0
        %2205 = vmatprep.subr.mxu0 0.0
        %2206 = vmatpush1.msra.mxu0 0.0
        %2207 = vmatprep.subr.mxu0 0.0
        %2208 = vmatpush1.msra.mxu0 0.0
        %2209 = vmatprep.subr.mxu0 0.0
        %2210 = vmatpush1.msra.mxu0 0.0
        %2211 = vmatprep.subr.mxu0 0.0
        %2212 = vmatpush1.msra.mxu0 0.0
        %2213 = vmatprep.subr.mxu0 0.0
        %2214 = vmatpush1.msra.mxu0 0.0
        %2215 = vmatprep.subr.mxu0 0.0
        %2216 = vmatpush1.msra.mxu0 0.0
        %2217 = vmatprep.subr.mxu0 0.0
        %2218 = vmatpush1.msra.mxu0 0.0
        %2219 = vmatprep.subr.mxu0 0.0
        %2220 = vmatpush1.msra.mxu0 0.0
        %2221 = vmatprep.subr.mxu0 0.0
        %2222 = vmatpush1.msra.mxu0 0.0
        %2223 = vmatprep.subr.mxu0 0.0
        %2224 = vmatpush1.msra.mxu0 0.0
        %2225 = vmatprep.subr.mxu0 0.0
        %2226 = vmatpush1.msra.mxu0 0.0
        %2227 = vmatprep.subr.mxu0 0.0
        %2228 = vmatpush1.msra.mxu0 0.0
        %2229 = vmatprep.subr.mxu0 0.0
        %2230 = vmatpush1.msra.mxu0 0.0
        %2231 = vmatprep.subr.mxu0 0.0
        %2232 = vmatpush1.msra.mxu0 0.0
        %2233 = vmatprep.subr.mxu0 0.0
        %2234 = vmatpush1.msra.mxu0 0.0
        %2235 = vmatprep.subr.mxu0 0.0
        %2236 = vmatpush1.msra.mxu0 0.0
        %2237 = vmatprep.mubr.f32.mxu0 0.0
        %2238 = vmatmul.mubr.f32.gmra.mrb[0].mxu0 %v2171
        %v2239 = vpop.f32.mrb[0].mxu0
        %v2240 = vadd.f32 0.0, %v2239
        %v2241 = vpop.f32.mrb[0].mxu0
        %2242 = vdwg.mxu0
        %2245 = vrot.lane.b32.xlu0 %v2161, 48
        %v2246 = vpop.permute.xlu0 %2245
        %2247 = vrot.lane.b32.xlu0 %v2240, 48
        %v2248 = vpop.permute.xlu0 %2247
        %vm2251 = vcmask 523648
        %2252 = vst.msk [vmem:[#allocation2] sm:$0xff] %vm2251, %v2246
        %2253 = vst.msk [vmem:[#allocation2 + $0x8] sm:$0xff] %vm2251, %v2248
        %v2254 = vld [vmem:[#allocation2] sm:$0xff]
        %v2255 = vld [vmem:[#allocation2 + $0x8] sm:$0xff]
        %v2256 = vld [vmem:[%s9] sm:$0xff]
        %v2257 = vld [vmem:[%s9 + $0x8] sm:$0xff]
        %v2258 = vld [vmem:[%s9 + $0x10] sm:$0xff]
        %v2259 = vld [vmem:[%s9 + $0x18] sm:$0xff]
        %v2260 = vld [vmem:[%s9 + $0x20] sm:$0xff]
        %v2261 = vld [vmem:[%s9 + $0x28] sm:$0xff]
        %v2262 = vld [vmem:[%s9 + $0x30] sm:$0xff]
        %v2263 = vld [vmem:[%s9 + $0x38] sm:$0xff]
        %vm2264 = vcmask 523264
        %v2266 = vsel %vm2264, %v2254, 0
        %v2269 = vsel %vm2264, %v2255, 0
        %2271 = vmatprep.subr.mxu0 0.0
        %2272 = vmatpush1.msra.mxu0 %v2256
        %2273 = vmatprep.subr.mxu0 0.0
        %2274 = vmatpush1.msra.mxu0 %v2257
        %2275 = vmatprep.subr.mxu0 0.0
        %2276 = vmatpush1.msra.mxu0 %v2258
        %2277 = vmatprep.subr.mxu0 0.0
        %2278 = vmatpush1.msra.mxu0 %v2259
        %2279 = vmatprep.subr.mxu0 0.0
        %2280 = vmatpush1.msra.mxu0 %v2260
        %2281 = vmatprep.subr.mxu0 0.0
        %2282 = vmatpush1.msra.mxu0 %v2261
        %2283 = vmatprep.subr.mxu0 0.0
        %2284 = vmatpush1.msra.mxu0 %v2262
        %2285 = vmatprep.subr.mxu0 0.0
        %2286 = vmatpush1.msra.mxu0 %v2263
        %2287 = vmatprep.subr.mxu0 0.0
        %2288 = vmatpush1.msra.mxu0 0.0
        %2289 = vmatprep.subr.mxu0 0.0
        %2290 = vmatpush1.msra.mxu0 0.0
        %2291 = vmatprep.subr.mxu0 0.0
        %2292 = vmatpush1.msra.mxu0 0.0
        %2293 = vmatprep.subr.mxu0 0.0
        %2294 = vmatpush1.msra.mxu0 0.0
        %2295 = vmatprep.subr.mxu0 0.0
        %2296 = vmatpush1.msra.mxu0 0.0
        %2297 = vmatprep.subr.mxu0 0.0
        %2298 = vmatpush1.msra.mxu0 0.0
        %2299 = vmatprep.subr.mxu0 0.0
        %2300 = vmatpush1.msra.mxu0 0.0
        %2301 = vmatprep.subr.mxu0 0.0
        %2302 = vmatpush1.msra.mxu0 0.0
        %2303 = vmatprep.subr.mxu0 0.0
        %2304 = vmatpush1.msra.mxu0 0.0
        %2305 = vmatprep.subr.mxu0 0.0
        %2306 = vmatpush1.msra.mxu0 0.0
        %2307 = vmatprep.subr.mxu0 0.0
        %2308 = vmatpush1.msra.mxu0 0.0
        %2309 = vmatprep.subr.mxu0 0.0
        %2310 = vmatpush1.msra.mxu0 0.0
        %2311 = vmatprep.subr.mxu0 0.0
        %2312 = vmatpush1.msra.mxu0 0.0
        %2313 = vmatprep.subr.mxu0 0.0
        %2314 = vmatpush1.msra.mxu0 0.0
        %2315 = vmatprep.subr.mxu0 0.0
        %2316 = vmatpush1.msra.mxu0 0.0
        %2317 = vmatprep.subr.mxu0 0.0
        %2318 = vmatpush1.msra.mxu0 0.0
        %2319 = vmatprep.subr.mxu0 0.0
        %2320 = vmatpush1.msra.mxu0 0.0
        %2321 = vmatprep.subr.mxu0 0.0
        %2322 = vmatpush1.msra.mxu0 0.0
        %2323 = vmatprep.subr.mxu0 0.0
        %2324 = vmatpush1.msra.mxu0 0.0
        %2325 = vmatprep.subr.mxu0 0.0
        %2326 = vmatpush1.msra.mxu0 0.0
        %2327 = vmatprep.subr.mxu0 0.0
        %2328 = vmatpush1.msra.mxu0 0.0
        %2329 = vmatprep.subr.mxu0 0.0
        %2330 = vmatpush1.msra.mxu0 0.0
        %2331 = vmatprep.subr.mxu0 0.0
        %2332 = vmatpush1.msra.mxu0 0.0
        %2333 = vmatprep.subr.mxu0 0.0
        %2334 = vmatpush1.msra.mxu0 0.0
        %2335 = vmatprep.mubr.f32.mxu0 0.0
        %2336 = vmatmul.mubr.f32.gmra.mrb[0].mxu0 %v2266
        %v2337 = vpop.f32.mrb[0].mxu0
        %v2338 = vadd.f32 0.0, %v2337
        %v2339 = vpop.f32.mrb[0].mxu0
        %2340 = vmatprep.mubr.f32.mxu0 0.0
        %2341 = vmatmul.mubr.f32.gmra.mrb[0].mxu0 %v2269
        %v2342 = vpop.f32.mrb[0].mxu0
        %v2343 = vadd.f32 0.0, %v2342
        %v2344 = vpop.f32.mrb[0].mxu0
        %2345 = vdwg.mxu0
        %2346 = vst.msk [vmem:[%s440] sm:$0xff] %vm463, %v2338
        %2347 = vst.msk [vmem:[%s440 + $0x8] sm:$0xff] %vm463, %v2343
        %s2348 = sand.u32 %s255, 1
        %s2349 = scalar_lea.sflag [#allocation5], %s2348
        %s2350 = sand.u32 %s255, 1
        %s2351 = smul.addr %s2350, 16
        %s2352 = scalar_lea.vmem [#allocation12], %s2351
        // Predicated region
        $region81: #{tpu_custom_call.1} parent=59 // pred_check
          %p2353 = pneg %p265
        $region82: #{tpu_custom_call.1} parent=59 // pred_check_branch
          %2355 = sbr.rel (%p2353) target = $region84
        $region83: #{tpu_custom_call.1} parent=59 // pred_region
          %s2356 = smul.u32 2, %s27
          %s2358 = ssub.s32 256, 256
          %2359 = vsyncadd %s2349, %s2358
          %s2360 = smul.addr %s2356, 128
          %s2361 = scalar_lea.hbm %s10, %s2360
          %s2362 = sshll.u32 %s2352, 4
          %s2363 = int_to_ptr.vmem [resolvable:$true] %s2362
          %2368 = dma.vmem_to_hbm [thread:$0]  %s2363, 256, %s2361, %s2349, 128, 128, 8
        $region84: #{tpu_custom_call.1} parent=59 // pred_fallthru
          _
      $region60: #{tpu_custom_call.1} parent=5 // pred_fallthru
        _
      %p2369 = scmp.le.s32.totalorder 2, %s22
      // Predicated region
      $region85: #{tpu_custom_call.1} parent=5 // pred_check
        %p2370 = pneg %p2369
      $region86: #{tpu_custom_call.1} parent=5 // pred_check_branch
        %2372 = sbr.rel (%p2370) target = $region88
      $region87: #{tpu_custom_call.1} parent=5 // pred_region
        %s2373 = ssub.s32 %s22, 2
        // Predicated region
        $region89: #{tpu_custom_call.1} parent=87 // pred_check
          %p2374 = pneg %p271
        $region90: #{tpu_custom_call.1} parent=87 // pred_check_branch
          %2376 = sbr.rel (%p2374) target = $region92
        $region91: #{tpu_custom_call.1} parent=87 // pred_region
          %s2377 = sand.u32 %s256, 1
          %s2378 = scalar_lea.sflag [#allocation5], %s2377
          %s2379 = sand.u32 %s256, 1
          %s2380 = smul.addr %s2379, 16
          %s2381 = scalar_lea.vmem [#allocation12], %s2380
          %2382 = dma.done %s2378, 256
        $region92: #{tpu_custom_call.1} parent=87 // pred_fallthru
          _
      $region88: #{tpu_custom_call.1} parent=5 // pred_fallthru
        _
    $region6: #{tpu_custom_call.1} parent=1 // loop_footer
      %s26 = sadd.s32 1, %s22
    $region7: #{tpu_custom_call.1} parent=1 // loop_footer_branch
      %21 = sbr.rel target = $region3
    $region8: #{tpu_custom_call.1} parent=1 // loop_exit
      _
    %2383 = vsyncpa [#allocation4], 1
    %s2384 = scalar_lea.sflag [#allocation4], 1
    %2385 = vsyncpa %s2384, 1
    %2386 = vsyncpa [#allocation7], 1
    %2387 = vsyncpa [#allocation10], 1
    %2388 = vsyncpa [#allocation5], 1
    %s2389 = scalar_lea.sflag [#allocation5], 1
    %2390 = vsyncpa %s2389, 1

</llo_original>
